<compile_context>
chip_gen: v7x
topology: tpu7x:2x2x1
jax: 0.10.0
libtpu: 0.0.40
codegen_flags: <defaults>
</compile_context>

<pallas_src>
import functools

import jax
import jax.numpy as jnp
from jax.experimental import pallas as pl
from jax.experimental.pallas import tpu as pltpu


# ---------------------------------------------------------------------------
# Kernel
# ---------------------------------------------------------------------------
def _coupling_kernel(x_ref, b_ref, w1_ref, b1_ref, ws2_ref, wt2_ref,
                     bs2_ref, bt2_ref, out_ref, *, lj_lane):
    x = x_ref[...]                                   # [TB, Dp] f32
    b = b_ref[...]                                   # [1, Dp]  f32 (padded lanes = 1)
    bx = b * x                                       # masked input (VPU, f32)

    w1 = w1_ref[...]                                 # [Dp, 2Hp]
    # Fused first layer of both sub-nets: one MXU matmul + one wide tanh (EUP).
    h = jnp.tanh(
        jnp.dot(bx.astype(w1.dtype), w1,
                preferred_element_type=jnp.float32) + b1_ref[...])   # [TB, 2Hp]

    hp = ws2_ref.shape[0]                            # Hp (multiple of 128 -> aligned slice)
    s = jnp.dot(h[:, :hp].astype(ws2_ref.dtype), ws2_ref[...],
                preferred_element_type=jnp.float32) + bs2_ref[...]   # [TB, Dp]
    t = jnp.dot(h[:, hp:].astype(wt2_ref.dtype), wt2_ref[...],
                preferred_element_type=jnp.float32) + bt2_ref[...]   # [TB, Dp]

    one_minus_b = 1.0 - b
    # Padded lanes: b == 1  ->  y = 1*0 + 0*(...) = 0, and they add 0 to logjac.
    y = bx + one_minus_b * (jnp.exp(s) * x + t)
    lj = jnp.sum(one_minus_b * s, axis=1, keepdims=True)             # [TB, 1]

    # Fold logjac into the spare padded lane `lj_lane` -> single lane-dense store.
    lane = jax.lax.broadcasted_iota(jnp.int32, y.shape, 1)
    out_ref[...] = jnp.where(lane == lj_lane, lj, y).astype(out_ref.dtype)


# ---------------------------------------------------------------------------
# One-time parameter packing (hoisted out of the per-call path)
# ---------------------------------------------------------------------------
def _round_up(v, m):
    return ((v + m - 1) // m) * m


def pack_coupling_params(params, b_mask, *, mm_dtype=jnp.bfloat16):
    """Lane-pad D->Dp, H->Hp (multiples of 128), fuse first layers, split second.

    mm_dtype=jnp.float32 is the validation escape hatch (no bf16 matmul error).
    """
    D, H = params["ws1"].shape
    Dp = _round_up(D + 1, 128)   # +1: spare lane D carries logjac in the output slab
    Hp = _round_up(H, 128)

    def pad2(a, rows, cols):
        return jnp.zeros((rows, cols), jnp.float32).at[:a.shape[0], :a.shape[1]].set(a)

    w1 = jnp.concatenate([pad2(params["ws1"], Dp, Hp),
                          pad2(params["wt1"], Dp, Hp)], axis=1).astype(mm_dtype)  # [Dp, 2Hp]
    b1 = jnp.concatenate([pad2(params["bs1"], 1, Hp),
                          pad2(params["bt1"], 1, Hp)], axis=1)                    # [1, 2Hp] f32
    ws2 = pad2(params["ws2"], Hp, Dp).astype(mm_dtype)                            # [Hp, Dp]
    wt2 = pad2(params["wt2"], Hp, Dp).astype(mm_dtype)                            # [Hp, Dp]
    bs2 = pad2(params["bs2"], 1, Dp)
    bt2 = pad2(params["bt2"], 1, Dp)
    # Mask padded with ONES so padded y lanes = b*x = 0 and (1-b)*s = 0 there.
    bm = jnp.ones((1, Dp), jnp.float32).at[0, :D].set(b_mask.astype(jnp.float32))
    return {"w1": w1, "b1": b1, "ws2": ws2, "wt2": wt2, "bs2": bs2, "bt2": bt2,
            "b": bm, "D": D, "H": H, "Dp": Dp, "Hp": Hp}


# ---------------------------------------------------------------------------
# Wrapper
# ---------------------------------------------------------------------------
def nvp_coupling_forward(x, packed, *, block_b=1024, out_dtype=jnp.float32,
                         vmem_budget_bytes=48 * 1024 * 1024):
    """x: [B, D] f32; packed: output of pack_coupling_params."""
    B, D = x.shape
    assert D == packed["D"], "x feature dim does not match packed params"
    Dp, Hp = packed["Dp"], packed["Hp"]

    weight_names = ("b", "w1", "b1", "ws2", "wt2", "bs2", "bt2")
    weight_bytes = sum(int(packed[n].size) * packed[n].dtype.itemsize
                       for n in weight_names)

    # Per-row pipelined VMEM: x (f32) + output slab, double-buffered, plus a
    # rough allowance for in-kernel f32 intermediates (bx, h, s, t, y).
    out_itemsize = jnp.dtype(out_dtype).itemsize
    per_row = 2 * Dp * 4 + 2 * Dp * out_itemsize + 16 * Dp + 12 * Hp

    # Batch tile: largest multiple of 8 that fits the VMEM budget (weights
    # counted twice to stay safe under the double-buffered fallback).
    tb_cap = max(8, ((vmem_budget_bytes - 2 * weight_bytes) // per_row) // 8 * 8)
    tb = max(8, min(block_b, tb_cap, _round_up(B, 8)) // 8 * 8)
    # Guarantee >= 2 grid steps so the "parallel" batch axis can shard across
    # both v7x TensorCores (harmless on single-TC v5e/v6e).
    if _round_up(B, tb) // tb < 2 and B > 8:
        tb = max(8, _round_up(pl.cdiv(B, 2), 8))
    b_pad = _round_up(B, tb)
    grid = (b_pad // tb,)

    xp = x
    if b_pad != B or Dp != D:
        xp = jnp.pad(x, ((0, b_pad - B), (0, Dp - D)))

    vmem_limit = int(min(vmem_budget_bytes,
                         max(32 * 1024 * 1024,
                             2 * weight_bytes + per_row * tb + 8 * 1024 * 1024)))

    flops = int(2 * b_pad * Dp * 2 * Hp          # fused first-layer matmul
                + 2 * (2 * b_pad * Hp * Dp)      # two second-layer matmuls
                + 8 * b_pad * Dp)                # elementwise epilogue
    transcendentals = int(b_pad * (2 * Hp + Dp))
    bytes_accessed = int(4 * b_pad * Dp + out_itemsize * b_pad * Dp + weight_bytes)

    kernel = functools.partial(_coupling_kernel, lj_lane=D)

    def call(weight_buffers):
        def wspec(shape):
            # Constant-index (VMEM-resident) operands: single-buffer them.
            if weight_buffers == 1:
                return pl.BlockSpec(shape, lambda i: (0, 0),
                                    pipeline_mode=pl.Buffered(1))
            return pl.BlockSpec(shape, lambda i: (0, 0))

        return pl.pallas_call(
            kernel,
            out_shape=jax.ShapeDtypeStruct((b_pad, Dp), out_dtype),
            grid=grid,
            in_specs=[
                pl.BlockSpec((tb, Dp), lambda i: (i, 0)),   # x tile (HBM-pipelined)
                wspec((1, Dp)),                             # mask   (VMEM-resident)
                wspec((Dp, 2 * Hp)),                        # fused W1
                wspec((1, 2 * Hp)),                         # fused b1
                wspec((Hp, Dp)),                            # ws2
                wspec((Hp, Dp)),                            # wt2
                wspec((1, Dp)),                             # bs2
                wspec((1, Dp)),                             # bt2
            ],
            out_specs=pl.BlockSpec((tb, Dp), lambda i: (i, 0)),
            compiler_params=pltpu.CompilerParams(
                dimension_semantics=("parallel",),          # v7x: shard over 2 TCs
                vmem_limit_bytes=vmem_limit),
            cost_estimate=pl.CostEstimate(
                flops=flops, transcendentals=transcendentals,
                bytes_accessed=bytes_accessed),
        )(xp, packed["b"], packed["w1"], packed["b1"],
          packed["ws2"], packed["wt2"], packed["bs2"], packed["bt2"])

    try:
        out = call(1)      # single-buffered resident weights
    except Exception:      # fallback if BlockSpec(pipeline_mode=...) unsupported
        out = call(2)

    y = out[:B, :D]
    logjac = out[:B, D]    # spare lane D of the slab carries logjac
    return y, logjac


# ---------------------------------------------------------------------------
# References
# ---------------------------------------------------------------------------
def _reference_forward_f32(x, b_mask, params):
    """Pure-JAX f32 reference mirroring the PyTorch semantics exactly."""
    hi = jax.lax.Precision.HIGHEST
    b = b_mask.reshape(1, -1)
    bx = b * x
    hs = jnp.tanh(jnp.dot(bx, params["ws1"], precision=hi) + params["bs1"])
    s = jnp.dot(hs, params["ws2"], precision=hi) + params["bs2"]
    ht = jnp.tanh(jnp.dot(bx, params["wt1"], precision=hi) + params["bt1"])
    t = jnp.dot(ht, params["wt2"], precision=hi) + params["bt2"]
    y = b * x + (1.0 - b) * (jnp.exp(s) * x + t)
    logjac = jnp.sum((1.0 - b) * s, axis=1)
    return y, logjac


def _reference_forward_matched(x, b_mask, params, mm_dtype):
    """Pure-JAX reference with the kernel's bf16-matmul / f32-accumulate recipe."""
    b = b_mask.reshape(1, -1).astype(jnp.float32)
    bx = b * x
    hs = jnp.tanh(jnp.dot(bx.astype(mm_dtype), params["ws1"].astype(mm_dtype),
                          preferred_element_type=jnp.float32) + params["bs1"])
    s = jnp.dot(hs.astype(mm_dtype), params["ws2"].astype(mm_dtype),
                preferred_element_type=jnp.float32) + params["bs2"]
    ht = jnp.tanh(jnp.dot(bx.astype(mm_dtype), params["wt1"].astype(mm_dtype),
                          preferred_element_type=jnp.float32) + params["bt1"])
    t = jnp.dot(ht.astype(mm_dtype), params["wt2"].astype(mm_dtype),
                preferred_element_type=jnp.float32) + params["bt2"]
    y = bx + (1.0 - b) * (jnp.exp(s) * x + t)
    logjac = jnp.sum((1.0 - b) * s, axis=1)
    return y, logjac


def _init_params(key, dim, hidden):
    ks = jax.random.split(key, 8)
    scale1 = 1.0 / jnp.sqrt(dim)
    scale2 = 1.0 / jnp.sqrt(hidden)
    return {
        "ws1": jax.random.normal(ks[0], (dim, hidden), jnp.float32) * scale1,
        "bs1": jax.random.normal(ks[1], (1, hidden), jnp.float32) * scale1,
        "ws2": jax.random.normal(ks[2], (hidden, dim), jnp.float32) * scale2,
        "bs2": jax.random.normal(ks[3], (1, dim), jnp.float32) * scale2,
        "wt1": jax.random.normal(ks[4], (dim, hidden), jnp.float32) * scale1,
        "bt1": jax.random.normal(ks[5], (1, hidden), jnp.float32) * scale1,
        "wt2": jax.random.normal(ks[6], (hidden, dim), jnp.float32) * scale2,
        "bt2": jax.random.normal(ks[7], (1, dim), jnp.float32) * scale2,
    }


if __name__ == "__main__":
    # Small deterministic shapes; B not a multiple of 8 to exercise padding,
    # and the >=2-step grid split exercises the multi-tile / megacore path.
    B, D, H = 37, 16, 32
    key = jax.random.PRNGKey(0)
    k_x, k_p = jax.random.split(key)

    x = jax.random.normal(k_x, (B, D), jnp.float32)
    b_mask = (jnp.arange(D) % 2).astype(jnp.float32)   # alternating binary mask
    params = _init_params(k_p, D, H)

    # Fast path: bf16 matmuls (weights packed once, reused across calls).
    packed_bf16 = pack_coupling_params(params, b_mask, mm_dtype=jnp.bfloat16)
    y, logjac = nvp_coupling_forward(x, packed_bf16)
    jax.block_until_ready((y, logjac))

    # Tight check against a reference using the same bf16-matmul recipe.
    y_m, lj_m = _reference_forward_matched(x, b_mask, params, jnp.bfloat16)
    assert jnp.allclose(y, y_m, atol=2e-3, rtol=2e-3), "mismatch vs matched ref (y)"
    assert jnp.allclose(logjac, lj_m, atol=2e-3, rtol=2e-3), "mismatch vs matched ref (logjac)"

    # Loose check against the full-f32 PyTorch-equivalent semantics.
    y_f, lj_f = _reference_forward_f32(x, b_mask, params)
    assert jnp.allclose(y, y_f, atol=1e-1, rtol=1e-1), "mismatch vs f32 ref (y)"
    assert jnp.allclose(logjac, lj_f, atol=1e-1, rtol=1e-1), "mismatch vs f32 ref (logjac)"

    # Validation escape hatch: f32 weights (no bf16 cast of the operands).
    # Tolerance stays loose because default matmul precision differs across
    # XLA/Mosaic; exact-match validation would require pinning precision.
    packed_f32 = pack_coupling_params(params, b_mask, mm_dtype=jnp.float32)
    y32, lj32 = nvp_coupling_forward(x, packed_f32)
    jax.block_until_ready((y32, lj32))
    assert jnp.allclose(y32, y_f, atol=1e-1, rtol=1e-1), "mismatch vs f32 ref (y, f32 path)"
    assert jnp.allclose(lj32, lj_f, atol=1e-1, rtol=1e-1), "mismatch vs f32 ref (logjac, f32 path)"

    print("KERNEL_OK")
</pallas_src>

<mosaic_0001>
module attributes {stable_mosaic.version = 11 : i64} {
  func.func @_coupling_kernel(%arg0: i32, %arg1: memref<24x128xf32, #tpu.memory_space<vmem>>, %arg2: memref<1x128xf32, #tpu.memory_space<vmem>>, %arg3: memref<128x256xbf16, #tpu.memory_space<vmem>>, %arg4: memref<1x256xf32, #tpu.memory_space<vmem>>, %arg5: memref<128x128xbf16, #tpu.memory_space<vmem>>, %arg6: memref<128x128xbf16, #tpu.memory_space<vmem>>, %arg7: memref<1x128xf32, #tpu.memory_space<vmem>>, %arg8: memref<1x128xf32, #tpu.memory_space<vmem>>, %arg9: memref<24x128xf32, #tpu.memory_space<vmem>>) attributes {dimension_semantics = [#tpu.dimension_semantics<parallel>], iteration_bounds = array<i64: 2>, scalar_prefetch = 0 : i64, scratch_operands = 0 : i64, tpu.core_type = #tpu.core_type<tc>, window_params = [{transform_indices = @transform_0, window_bounds = array<i64: 24, 128>}, {pipeline_mode = #tpu.pipeline_mode<synchronous>, transform_indices = @transform_1, window_bounds = array<i64: 1, 128>}, {pipeline_mode = #tpu.pipeline_mode<synchronous>, transform_indices = @transform_2, window_bounds = array<i64: 128, 256>}, {pipeline_mode = #tpu.pipeline_mode<synchronous>, transform_indices = @transform_3, window_bounds = array<i64: 1, 256>}, {pipeline_mode = #tpu.pipeline_mode<synchronous>, transform_indices = @transform_4, window_bounds = array<i64: 128, 128>}, {pipeline_mode = #tpu.pipeline_mode<synchronous>, transform_indices = @transform_5, window_bounds = array<i64: 128, 128>}, {pipeline_mode = #tpu.pipeline_mode<synchronous>, transform_indices = @transform_6, window_bounds = array<i64: 1, 128>}, {pipeline_mode = #tpu.pipeline_mode<synchronous>, transform_indices = @transform_7, window_bounds = array<i64: 1, 128>}, {transform_indices = @transform_8, window_bounds = array<i64: 24, 128>}]} {
    %c0 = arith.constant 0 : index
    %c0_0 = arith.constant 0 : index
    %0 = vector.load %arg1[%c0, %c0_0] : memref<24x128xf32, #tpu.memory_space<vmem>>, vector<24x128xf32>
    %c0_1 = arith.constant 0 : index
    %c0_2 = arith.constant 0 : index
    %1 = vector.load %arg2[%c0_1, %c0_2] : memref<1x128xf32, #tpu.memory_space<vmem>>, vector<1x128xf32>
    %2 = vector.broadcast %1 : vector<1x128xf32> to vector<24x128xf32>
    %3 = arith.mulf %2, %0 : vector<24x128xf32>
    %c0_3 = arith.constant 0 : index
    %c0_4 = arith.constant 0 : index
    %4 = vector.load %arg3[%c0_3, %c0_4] : memref<128x256xbf16, #tpu.memory_space<vmem>>, vector<128x256xbf16>
    %5 = arith.truncf %3 : vector<24x128xf32> to vector<24x128xbf16>
    %cst = arith.constant dense<0.000000e+00> : vector<24x256xf32>
    %6 = tpu.matmul %5, %4, %cst {dimension_numbers = #tpu.dot_dimension_numbers<[1], [0], [0], [1], [0, 0, 1, 1], [], []>} : vector<24x128xbf16>, vector<128x256xbf16>, vector<24x256xf32> -> vector<24x256xf32>
    %c0_5 = arith.constant 0 : index
    %c0_6 = arith.constant 0 : index
    %7 = vector.load %arg4[%c0_5, %c0_6] : memref<1x256xf32, #tpu.memory_space<vmem>>, vector<1x256xf32>
    %8 = vector.broadcast %7 : vector<1x256xf32> to vector<24x256xf32>
    %9 = arith.addf %6, %8 : vector<24x256xf32>
    %10 = math.tanh %9 : vector<24x256xf32>
    %11 = vector.extract_strided_slice %10 {offsets = [0, 0], sizes = [24, 128], strides = [1, 1]} : vector<24x256xf32> to vector<24x128xf32>
    %12 = arith.truncf %11 : vector<24x128xf32> to vector<24x128xbf16>
    %c0_7 = arith.constant 0 : index
    %c0_8 = arith.constant 0 : index
    %13 = vector.load %arg5[%c0_7, %c0_8] : memref<128x128xbf16, #tpu.memory_space<vmem>>, vector<128x128xbf16>
    %cst_9 = arith.constant dense<0.000000e+00> : vector<24x128xf32>
    %14 = tpu.matmul %12, %13, %cst_9 {dimension_numbers = #tpu.dot_dimension_numbers<[1], [0], [0], [1], [0, 0, 1, 1], [], []>} : vector<24x128xbf16>, vector<128x128xbf16>, vector<24x128xf32> -> vector<24x128xf32>
    %c0_10 = arith.constant 0 : index
    %c0_11 = arith.constant 0 : index
    %15 = vector.load %arg7[%c0_10, %c0_11] : memref<1x128xf32, #tpu.memory_space<vmem>>, vector<1x128xf32>
    %16 = vector.broadcast %15 : vector<1x128xf32> to vector<24x128xf32>
    %17 = arith.addf %14, %16 : vector<24x128xf32>
    %18 = vector.extract_strided_slice %10 {offsets = [0, 128], sizes = [24, 128], strides = [1, 1]} : vector<24x256xf32> to vector<24x128xf32>
    %19 = arith.truncf %18 : vector<24x128xf32> to vector<24x128xbf16>
    %c0_12 = arith.constant 0 : index
    %c0_13 = arith.constant 0 : index
    %20 = vector.load %arg6[%c0_12, %c0_13] : memref<128x128xbf16, #tpu.memory_space<vmem>>, vector<128x128xbf16>
    %cst_14 = arith.constant dense<0.000000e+00> : vector<24x128xf32>
    %21 = tpu.matmul %19, %20, %cst_14 {dimension_numbers = #tpu.dot_dimension_numbers<[1], [0], [0], [1], [0, 0, 1, 1], [], []>} : vector<24x128xbf16>, vector<128x128xbf16>, vector<24x128xf32> -> vector<24x128xf32>
    %c0_15 = arith.constant 0 : index
    %c0_16 = arith.constant 0 : index
    %22 = vector.load %arg8[%c0_15, %c0_16] : memref<1x128xf32, #tpu.memory_space<vmem>>, vector<1x128xf32>
    %23 = vector.broadcast %22 : vector<1x128xf32> to vector<24x128xf32>
    %24 = arith.addf %21, %23 : vector<24x128xf32>
    %cst_17 = arith.constant 1.000000e+00 : f32
    %25 = vector.broadcast %cst_17 : f32 to vector<1x128xf32>
    %26 = arith.subf %25, %1 : vector<1x128xf32>
    %27 = math.exp %17 : vector<24x128xf32>
    %28 = arith.mulf %27, %0 : vector<24x128xf32>
    %29 = arith.addf %28, %24 : vector<24x128xf32>
    %30 = vector.broadcast %26 : vector<1x128xf32> to vector<24x128xf32>
    %31 = arith.mulf %30, %29 : vector<24x128xf32>
    %32 = arith.addf %3, %31 : vector<24x128xf32>
    %33 = vector.broadcast %26 : vector<1x128xf32> to vector<24x128xf32>
    %34 = arith.mulf %33, %17 : vector<24x128xf32>
    %cst_18 = arith.constant dense<0.000000e+00> : vector<24xf32>
    %35 = vector.multi_reduction <add>, %34, %cst_18 [1] : vector<24x128xf32> to vector<24xf32>
    %36 = vector.shape_cast %35 : vector<24xf32> to vector<24x1xf32>
    %37 = tpu.iota {dimensions = array<i32: 1>} : vector<24x128xi32>
    %c16_i32 = arith.constant 16 : i32
    %38 = vector.broadcast %c16_i32 : i32 to vector<24x128xi32>
    %39 = arith.cmpi eq, %37, %38 : vector<24x128xi32>
    %40 = vector.shape_cast %36 : vector<24x1xf32> to vector<24x1xf32>
    %41 = vector.broadcast %40 : vector<24x1xf32> to vector<24x128xf32>
    %42 = arith.select %39, %41, %32 : vector<24x128xi1>, vector<24x128xf32>
    %c0_19 = arith.constant 0 : index
    %c0_20 = arith.constant 0 : index
    %43 = vector.load %arg9[%c0_19, %c0_20] : memref<24x128xf32, #tpu.memory_space<vmem>>, vector<24x128xf32>
    tpu.vector_store %arg9[%c0_19, %c0_20], %42 {strides = array<i32>} : memref<24x128xf32, #tpu.memory_space<vmem>>, vector<24x128xf32>,
    return
  }
  func.func @transform_0(%arg0: i32) -> (i32, i32) {
    %c0_i32 = arith.constant 0 : i32
    %c0_i32_0 = arith.constant 0 : i32
    return %arg0, %c0_i32 : i32, i32
  }
  func.func @transform_1(%arg0: i32) -> (i32, i32) {
    %c0_i32 = arith.constant 0 : i32
    %c0_i32_0 = arith.constant 0 : i32
    %c0_i32_1 = arith.constant 0 : i32
    return %c0_i32, %c0_i32_0 : i32, i32
  }
  func.func @transform_2(%arg0: i32) -> (i32, i32) {
    %c0_i32 = arith.constant 0 : i32
    %c0_i32_0 = arith.constant 0 : i32
    %c0_i32_1 = arith.constant 0 : i32
    return %c0_i32, %c0_i32_0 : i32, i32
  }
  func.func @transform_3(%arg0: i32) -> (i32, i32) {
    %c0_i32 = arith.constant 0 : i32
    %c0_i32_0 = arith.constant 0 : i32
    %c0_i32_1 = arith.constant 0 : i32
    return %c0_i32, %c0_i32_0 : i32, i32
  }
  func.func @transform_4(%arg0: i32) -> (i32, i32) {
    %c0_i32 = arith.constant 0 : i32
    %c0_i32_0 = arith.constant 0 : i32
    %c0_i32_1 = arith.constant 0 : i32
    return %c0_i32, %c0_i32_0 : i32, i32
  }
  func.func @transform_5(%arg0: i32) -> (i32, i32) {
    %c0_i32 = arith.constant 0 : i32
    %c0_i32_0 = arith.constant 0 : i32
    %c0_i32_1 = arith.constant 0 : i32
    return %c0_i32, %c0_i32_0 : i32, i32
  }
  func.func @transform_6(%arg0: i32) -> (i32, i32) {
    %c0_i32 = arith.constant 0 : i32
    %c0_i32_0 = arith.constant 0 : i32
    %c0_i32_1 = arith.constant 0 : i32
    return %c0_i32, %c0_i32_0 : i32, i32
  }
  func.func @transform_7(%arg0: i32) -> (i32, i32) {
    %c0_i32 = arith.constant 0 : i32
    %c0_i32_0 = arith.constant 0 : i32
    %c0_i32_1 = arith.constant 0 : i32
    return %c0_i32, %c0_i32_0 : i32, i32
  }
  func.func @transform_8(%arg0: i32) -> (i32, i32) {
    %c0_i32 = arith.constant 0 : i32
    %c0_i32_0 = arith.constant 0 : i32
    return %arg0, %c0_i32 : i32, i32
  }
}

module attributes {stable_mosaic.version = 11 : i64} {
  func.func @_coupling_kernel(%arg0: i32, %arg1: memref<24x128xf32, #tpu.memory_space<vmem>>, %arg2: memref<1x128xf32, #tpu.memory_space<vmem>>, %arg3: memref<128x256xbf16, #tpu.memory_space<vmem>>, %arg4: memref<1x256xf32, #tpu.memory_space<vmem>>, %arg5: memref<128x128xbf16, #tpu.memory_space<vmem>>, %arg6: memref<128x128xbf16, #tpu.memory_space<vmem>>, %arg7: memref<1x128xf32, #tpu.memory_space<vmem>>, %arg8: memref<1x128xf32, #tpu.memory_space<vmem>>, %arg9: memref<24x128xf32, #tpu.memory_space<vmem>>) attributes {dimension_semantics = [#tpu.dimension_semantics<parallel>], iteration_bounds = array<i64: 2>, scalar_prefetch = 0 : i64, scratch_operands = 0 : i64, tpu.core_type = #tpu.core_type<tc>, window_params = [{transform_indices = @transform_0, window_bounds = array<i64: 24, 128>}, {pipeline_mode = #tpu.pipeline_mode<synchronous>, transform_indices = @transform_1, window_bounds = array<i64: 1, 128>}, {pipeline_mode = #tpu.pipeline_mode<synchronous>, transform_indices = @transform_2, window_bounds = array<i64: 128, 256>}, {pipeline_mode = #tpu.pipeline_mode<synchronous>, transform_indices = @transform_3, window_bounds = array<i64: 1, 256>}, {pipeline_mode = #tpu.pipeline_mode<synchronous>, transform_indices = @transform_4, window_bounds = array<i64: 128, 128>}, {pipeline_mode = #tpu.pipeline_mode<synchronous>, transform_indices = @transform_5, window_bounds = array<i64: 128, 128>}, {pipeline_mode = #tpu.pipeline_mode<synchronous>, transform_indices = @transform_6, window_bounds = array<i64: 1, 128>}, {pipeline_mode = #tpu.pipeline_mode<synchronous>, transform_indices = @transform_7, window_bounds = array<i64: 1, 128>}, {transform_indices = @transform_8, window_bounds = array<i64: 24, 128>}]} {
    %c0 = arith.constant 0 : index
    %c0_0 = arith.constant 0 : index
    %0 = vector.load %arg1[%c0, %c0_0] : memref<24x128xf32, #tpu.memory_space<vmem>>, vector<24x128xf32>
    %c0_1 = arith.constant 0 : index
    %c0_2 = arith.constant 0 : index
    %1 = vector.load %arg2[%c0_1, %c0_2] : memref<1x128xf32, #tpu.memory_space<vmem>>, vector<1x128xf32>
    %2 = vector.broadcast %1 : vector<1x128xf32> to vector<24x128xf32>
    %3 = arith.mulf %2, %0 : vector<24x128xf32>
    %c0_3 = arith.constant 0 : index
    %c0_4 = arith.constant 0 : index
    %4 = vector.load %arg3[%c0_3, %c0_4] : memref<128x256xbf16, #tpu.memory_space<vmem>>, vector<128x256xbf16>
    %5 = arith.truncf %3 : vector<24x128xf32> to vector<24x128xbf16>
    %cst = arith.constant dense<0.000000e+00> : vector<24x256xf32>
    %6 = tpu.matmul %5, %4, %cst {dimension_numbers = #tpu.dot_dimension_numbers<[1], [0], [0], [1], [0, 0, 1, 1], [], []>} : vector<24x128xbf16>, vector<128x256xbf16>, vector<24x256xf32> -> vector<24x256xf32>
    %c0_5 = arith.constant 0 : index
    %c0_6 = arith.constant 0 : index
    %7 = vector.load %arg4[%c0_5, %c0_6] : memref<1x256xf32, #tpu.memory_space<vmem>>, vector<1x256xf32>
    %8 = vector.broadcast %7 : vector<1x256xf32> to vector<24x256xf32>
    %9 = arith.addf %6, %8 : vector<24x256xf32>
    %10 = math.tanh %9 : vector<24x256xf32>
    %11 = vector.extract_strided_slice %10 {offsets = [0, 0], sizes = [24, 128], strides = [1, 1]} : vector<24x256xf32> to vector<24x128xf32>
    %12 = arith.truncf %11 : vector<24x128xf32> to vector<24x128xbf16>
    %c0_7 = arith.constant 0 : index
    %c0_8 = arith.constant 0 : index
    %13 = vector.load %arg5[%c0_7, %c0_8] : memref<128x128xbf16, #tpu.memory_space<vmem>>, vector<128x128xbf16>
    %cst_9 = arith.constant dense<0.000000e+00> : vector<24x128xf32>
    %14 = tpu.matmul %12, %13, %cst_9 {dimension_numbers = #tpu.dot_dimension_numbers<[1], [0], [0], [1], [0, 0, 1, 1], [], []>} : vector<24x128xbf16>, vector<128x128xbf16>, vector<24x128xf32> -> vector<24x128xf32>
    %c0_10 = arith.constant 0 : index
    %c0_11 = arith.constant 0 : index
    %15 = vector.load %arg7[%c0_10, %c0_11] : memref<1x128xf32, #tpu.memory_space<vmem>>, vector<1x128xf32>
    %16 = vector.broadcast %15 : vector<1x128xf32> to vector<24x128xf32>
    %17 = arith.addf %14, %16 : vector<24x128xf32>
    %18 = vector.extract_strided_slice %10 {offsets = [0, 128], sizes = [24, 128], strides = [1, 1]} : vector<24x256xf32> to vector<24x128xf32>
    %19 = arith.truncf %18 : vector<24x128xf32> to vector<24x128xbf16>
    %c0_12 = arith.constant 0 : index
    %c0_13 = arith.constant 0 : index
    %20 = vector.load %arg6[%c0_12, %c0_13] : memref<128x128xbf16, #tpu.memory_space<vmem>>, vector<128x128xbf16>
    %cst_14 = arith.constant dense<0.000000e+00> : vector<24x128xf32>
    %21 = tpu.matmul %19, %20, %cst_14 {dimension_numbers = #tpu.dot_dimension_numbers<[1], [0], [0], [1], [0, 0, 1, 1], [], []>} : vector<24x128xbf16>, vector<128x128xbf16>, vector<24x128xf32> -> vector<24x128xf32>
    %c0_15 = arith.constant 0 : index
    %c0_16 = arith.constant 0 : index
    %22 = vector.load %arg8[%c0_15, %c0_16] : memref<1x128xf32, #tpu.memory_space<vmem>>, vector<1x128xf32>
    %23 = vector.broadcast %22 : vector<1x128xf32> to vector<24x128xf32>
    %24 = arith.addf %21, %23 : vector<24x128xf32>
    %cst_17 = arith.constant 1.000000e+00 : f32
    %25 = vector.broadcast %cst_17 : f32 to vector<1x128xf32>
    %26 = arith.subf %25, %1 : vector<1x128xf32>
    %27 = math.exp %17 : vector<24x128xf32>
    %28 = arith.mulf %27, %0 : vector<24x128xf32>
    %29 = arith.addf %28, %24 : vector<24x128xf32>
    %30 = vector.broadcast %26 : vector<1x128xf32> to vector<24x128xf32>
    %31 = arith.mulf %30, %29 : vector<24x128xf32>
    %32 = arith.addf %3, %31 : vector<24x128xf32>
    %33 = vector.broadcast %26 : vector<1x128xf32> to vector<24x128xf32>
    %34 = arith.mulf %33, %17 : vector<24x128xf32>
    %cst_18 = arith.constant dense<0.000000e+00> : vector<24xf32>
    %35 = vector.multi_reduction <add>, %34, %cst_18 [1] : vector<24x128xf32> to vector<24xf32>
    %36 = vector.shape_cast %35 : vector<24xf32> to vector<24x1xf32>
    %37 = tpu.iota {dimensions = array<i32: 1>} : vector<24x128xi32>
    %c16_i32 = arith.constant 16 : i32
    %38 = vector.broadcast %c16_i32 : i32 to vector<24x128xi32>
    %39 = arith.cmpi eq, %37, %38 : vector<24x128xi32>
    %40 = vector.shape_cast %36 : vector<24x1xf32> to vector<24x1xf32>
    %41 = vector.broadcast %40 : vector<24x1xf32> to vector<24x128xf32>
    %42 = arith.select %39, %41, %32 : vector<24x128xi1>, vector<24x128xf32>
    %c0_19 = arith.constant 0 : index
    %c0_20 = arith.constant 0 : index
    %43 = vector.load %arg9[%c0_19, %c0_20] : memref<24x128xf32, #tpu.memory_space<vmem>>, vector<24x128xf32>
    tpu.vector_store %arg9[%c0_19, %c0_20], %42 {strides = array<i32>} : memref<24x128xf32, #tpu.memory_space<vmem>>, vector<24x128xf32>,
    return
  }
  func.func @transform_0(%arg0: i32) -> (i32, i32) {
    %c0_i32 = arith.constant 0 : i32
    %c0_i32_0 = arith.constant 0 : i32
    return %arg0, %c0_i32 : i32, i32
  }
  func.func @transform_1(%arg0: i32) -> (i32, i32) {
    %c0_i32 = arith.constant 0 : i32
    %c0_i32_0 = arith.constant 0 : i32
    %c0_i32_1 = arith.constant 0 : i32
    return %c0_i32, %c0_i32_0 : i32, i32
  }
  func.func @transform_2(%arg0: i32) -> (i32, i32) {
    %c0_i32 = arith.constant 0 : i32
    %c0_i32_0 = arith.constant 0 : i32
    %c0_i32_1 = arith.constant 0 : i32
    return %c0_i32, %c0_i32_0 : i32, i32
  }
  func.func @transform_3(%arg0: i32) -> (i32, i32) {
    %c0_i32 = arith.constant 0 : i32
    %c0_i32_0 = arith.constant 0 : i32
    %c0_i32_1 = arith.constant 0 : i32
    return %c0_i32, %c0_i32_0 : i32, i32
  }
  func.func @transform_4(%arg0: i32) -> (i32, i32) {
    %c0_i32 = arith.constant 0 : i32
    %c0_i32_0 = arith.constant 0 : i32
    %c0_i32_1 = arith.constant 0 : i32
    return %c0_i32, %c0_i32_0 : i32, i32
  }
  func.func @transform_5(%arg0: i32) -> (i32, i32) {
    %c0_i32 = arith.constant 0 : i32
    %c0_i32_0 = arith.constant 0 : i32
    %c0_i32_1 = arith.constant 0 : i32
    return %c0_i32, %c0_i32_0 : i32, i32
  }
  func.func @transform_6(%arg0: i32) -> (i32, i32) {
    %c0_i32 = arith.constant 0 : i32
    %c0_i32_0 = arith.constant 0 : i32
    %c0_i32_1 = arith.constant 0 : i32
    return %c0_i32, %c0_i32_0 : i32, i32
  }
  func.func @transform_7(%arg0: i32) -> (i32, i32) {
    %c0_i32 = arith.constant 0 : i32
    %c0_i32_0 = arith.constant 0 : i32
    %c0_i32_1 = arith.constant 0 : i32
    return %c0_i32, %c0_i32_0 : i32, i32
  }
  func.func @transform_8(%arg0: i32) -> (i32, i32) {
    %c0_i32 = arith.constant 0 : i32
    %c0_i32_0 = arith.constant 0 : i32
    return %arg0, %c0_i32 : i32, i32
  }
}

</mosaic_0001>

<llo_original>
// kernel: tpu_custom_call.1
$region0: #{tpu_custom_call.1}
  #allocation0 [shape = 'u32[]', space=smem, size = 0x4, offset = 0x4, fixed_abs, tag = 'smem constant byte address 0x4 - core index']
  #allocation1 [shape = 'u32[144,128]{1,0:T(1,128)}', space=vmem, size = 0x12000, scoped, tag = 'internal scratch']
  %s0 = inlined_call_operand.hbm [shape: f32[48,128], index: 0, kind: input, shape index: {}]
  %s1 = inlined_call_operand.vmem [shape: f32[1,128], index: 1, kind: input, shape index: {}]
  %s2 = inlined_call_operand.hbm [shape: bf16[128,256], index: 2, kind: input, shape index: {}]
  %s3 = inlined_call_operand.vmem [shape: f32[1,256], index: 3, kind: input, shape index: {}]
  %s4 = inlined_call_operand.hbm [shape: bf16[128,128], index: 4, kind: input, shape index: {}]
  %s5 = inlined_call_operand.hbm [shape: bf16[128,128], index: 5, kind: input, shape index: {}]
  %s6 = inlined_call_operand.vmem [shape: f32[1,128], index: 6, kind: input, shape index: {}]
  %s7 = inlined_call_operand.vmem [shape: f32[1,128], index: 7, kind: input, shape index: {}]
  %s8 = inlined_call_operand.hbm [shape: f32[48,128], index: 8, kind: output, shape index: {}]
  %s9 = sld [smem:[#allocation0]]
  $region81: #{tpu_custom_call.1} parent=0
    _
  %s11 = ssub.s32 1, %s9
  %s12 = scalar_select 0, %s11, %s9
  $region1: #{tpu_custom_call.1} parent=0
    #allocation2 [shape = 'u8[24576]{0}', space=vmem, size = 0x6000, scoped, tag = 'input window, operand 0']
    #allocation3 [shape = 's32[2]{0}', space=sflag, size = 0x8, scoped, tag = 'scoped memory for tpu_custom_call.1']
    #allocation4 [shape = 's32[2]{0}', space=sflag, size = 0x8, scoped, tag = 'scoped memory for tpu_custom_call.1']
    #allocation5 [shape = 'u8[65536]{0}', space=vmem, size = 0x10000, scoped, tag = 'input window, operand 2, single buffered']
    #allocation6 [shape = 's32[1]{0}', space=sflag, size = 0x4, scoped, tag = 'scoped memory for tpu_custom_call.1']
    #allocation7 [shape = 'u8[32768]{0}', space=vmem, size = 0x8000, scoped, tag = 'input window, operand 4, single buffered']
    #allocation8 [shape = 'u8[32768]{0}', space=vmem, size = 0x8000, scoped, tag = 'input window, operand 5, single buffered']
    #allocation9 [shape = 's32[1]{0}', space=sflag, size = 0x4, scoped, tag = 'scoped memory for tpu_custom_call.1']
    #allocation10 [shape = 'u8[24576]{0}', space=vmem, size = 0x6000, scoped, tag = 'output window, operand 0']
    %13 = vsyncpa [#allocation3], 0
    %s14 = scalar_lea.sflag [#allocation3], 1
    %15 = vsyncpa %s14, 0
    %16 = vsyncpa [#allocation6], 0
    %17 = vsyncpa [#allocation9], 0
    %18 = vsyncpa [#allocation4], 0
    %s19 = scalar_lea.sflag [#allocation4], 1
    %20 = vsyncpa %s19, 0
    loop: start=0, step=1, limit=4
    $region2: #{tpu_custom_call.1} parent=1 // loop_pre_header
      _
    $region3: #{tpu_custom_call.1} parent=1 // loop_header
      %s22 = sphi 0, %s26
      %p23 = scmp.ge.s32.totalorder %s22, 4
      %s32 = sphi 0, %s34
      %s35 = sphi 0, %s32
      %s36 = sphi 0, %s35
      %s52 = sphi 0, %s36
      %s56 = sphi 0, %s56
      %s58 = sphi 0, %s56
      %s59 = sphi 0, %s58
      %s73 = sphi 0, %s59
      %s77 = sphi 0, %s77
      %s79 = sphi 0, %s77
      %s80 = sphi 0, %s79
      %s94 = sphi 0, %s80
      %s98 = sphi 0, %s98
      %s100 = sphi 0, %s98
      %s101 = sphi 0, %s100
      %s115 = sphi 0, %s101
      %s119 = sphi 0, %s119
      %s121 = sphi 0, %s119
      %s122 = sphi 0, %s121
      %s136 = sphi 0, %s122
      %s140 = sphi 0, %s140
      %s142 = sphi 0, %s140
      %s143 = sphi 0, %s142
      %s157 = sphi 0, %s143
      %s161 = sphi 0, %s161
      %s163 = sphi 0, %s161
      %s164 = sphi 0, %s163
      %s178 = sphi 0, %s164
      %s182 = sphi 0, %s182
      %s184 = sphi 0, %s182
      %s185 = sphi 0, %s184
      %s199 = sphi 0, %s185
      %s205 = sphi 0, %s207
      %s208 = sphi 0, %s205
      %s209 = sphi 0, %s208
      %s225 = sphi 0, %s209
    $region4: #{tpu_custom_call.1} parent=1 // loop_header_branch
      %25 = sbr.rel (%p23) target = $region8
    $region5: #{tpu_custom_call.1} parent=1 // loop_body
      %s27 = ssub.s32 %s22, 1
      %s28 = ssub.s32 %s22, 2
      %s29 = sadd.s32 %s22, 1
      %s30 = ssub.s32 %s22, %s29
      %p31 = scmp.eq.s32.totalorder %s30, 0
      %s33 = sadd.s32 %s32, 1
      %s34 = scalar_select %p31, %s32, %s33
      %p37 = pneg %p31
      %p38 = scmp.eq.s32.totalorder %s22, 1
      %p39 = por %p37, %p38
      %p40 = scmp.ne.s32.totalorder %s32, %s35
      %p41 = scmp.eq.s32.totalorder %s22, 0
      %p42 = por %p40, %p41
      %p43 = scmp.ne.s32.totalorder %s32, %s35
      %p44 = scmp.eq.s32.totalorder %s27, 1
      %p45 = por %p43, %p44
      %p46 = scmp.ne.s32.totalorder %s35, %s36
      %p47 = scmp.eq.s32.totalorder %s27, 0
      %p48 = por %p46, %p47
      %p49 = scmp.ne.s32.totalorder %s35, %s36
      %p50 = scmp.eq.s32.totalorder %s28, 1
      %p51 = por %p49, %p50
      %p53 = scmp.ne.s32.totalorder %s36, %s52
      %p54 = scmp.eq.s32.totalorder %s28, 0
      %p55 = por %p53, %p54
      %s57 = sadd.s32 %s56, 1
      %p60 = scmp.eq.s32.totalorder %s22, 1
      %p61 = scmp.ne.s32.totalorder %s56, %s58
      %p62 = scmp.eq.s32.totalorder %s22, 0
      %p63 = por %p61, %p62
      %p64 = scmp.ne.s32.totalorder %s56, %s58
      %p65 = scmp.eq.s32.totalorder %s27, 1
      %p66 = por %p64, %p65
      %p67 = scmp.ne.s32.totalorder %s58, %s59
      %p68 = scmp.eq.s32.totalorder %s27, 0
      %p69 = por %p67, %p68
      %p70 = scmp.ne.s32.totalorder %s58, %s59
      %p71 = scmp.eq.s32.totalorder %s28, 1
      %p72 = por %p70, %p71
      %p74 = scmp.ne.s32.totalorder %s59, %s73
      %p75 = scmp.eq.s32.totalorder %s28, 0
      %p76 = por %p74, %p75
      %s78 = sadd.s32 %s77, 1
      %p81 = scmp.eq.s32.totalorder %s22, 1
      %p82 = scmp.ne.s32.totalorder %s77, %s79
      %p83 = scmp.eq.s32.totalorder %s22, 0
      %p84 = por %p82, %p83
      %p85 = scmp.ne.s32.totalorder %s77, %s79
      %p86 = scmp.eq.s32.totalorder %s27, 1
      %p87 = por %p85, %p86
      %p88 = scmp.ne.s32.totalorder %s79, %s80
      %p89 = scmp.eq.s32.totalorder %s27, 0
      %p90 = por %p88, %p89
      %p91 = scmp.ne.s32.totalorder %s79, %s80
      %p92 = scmp.eq.s32.totalorder %s28, 1
      %p93 = por %p91, %p92
      %p95 = scmp.ne.s32.totalorder %s80, %s94
      %p96 = scmp.eq.s32.totalorder %s28, 0
      %p97 = por %p95, %p96
      %s99 = sadd.s32 %s98, 1
      %p102 = scmp.eq.s32.totalorder %s22, 1
      %p103 = scmp.ne.s32.totalorder %s98, %s100
      %p104 = scmp.eq.s32.totalorder %s22, 0
      %p105 = por %p103, %p104
      %p106 = scmp.ne.s32.totalorder %s98, %s100
      %p107 = scmp.eq.s32.totalorder %s27, 1
      %p108 = por %p106, %p107
      %p109 = scmp.ne.s32.totalorder %s100, %s101
      %p110 = scmp.eq.s32.totalorder %s27, 0
      %p111 = por %p109, %p110
      %p112 = scmp.ne.s32.totalorder %s100, %s101
      %p113 = scmp.eq.s32.totalorder %s28, 1
      %p114 = por %p112, %p113
      %p116 = scmp.ne.s32.totalorder %s101, %s115
      %p117 = scmp.eq.s32.totalorder %s28, 0
      %p118 = por %p116, %p117
      %s120 = sadd.s32 %s119, 1
      %p123 = scmp.eq.s32.totalorder %s22, 1
      %p124 = scmp.ne.s32.totalorder %s119, %s121
      %p125 = scmp.eq.s32.totalorder %s22, 0
      %p126 = por %p124, %p125
      %p127 = scmp.ne.s32.totalorder %s119, %s121
      %p128 = scmp.eq.s32.totalorder %s27, 1
      %p129 = por %p127, %p128
      %p130 = scmp.ne.s32.totalorder %s121, %s122
      %p131 = scmp.eq.s32.totalorder %s27, 0
      %p132 = por %p130, %p131
      %p133 = scmp.ne.s32.totalorder %s121, %s122
      %p134 = scmp.eq.s32.totalorder %s28, 1
      %p135 = por %p133, %p134
      %p137 = scmp.ne.s32.totalorder %s122, %s136
      %p138 = scmp.eq.s32.totalorder %s28, 0
      %p139 = por %p137, %p138
      %s141 = sadd.s32 %s140, 1
      %p144 = scmp.eq.s32.totalorder %s22, 1
      %p145 = scmp.ne.s32.totalorder %s140, %s142
      %p146 = scmp.eq.s32.totalorder %s22, 0
      %p147 = por %p145, %p146
      %p148 = scmp.ne.s32.totalorder %s140, %s142
      %p149 = scmp.eq.s32.totalorder %s27, 1
      %p150 = por %p148, %p149
      %p151 = scmp.ne.s32.totalorder %s142, %s143
      %p152 = scmp.eq.s32.totalorder %s27, 0
      %p153 = por %p151, %p152
      %p154 = scmp.ne.s32.totalorder %s142, %s143
      %p155 = scmp.eq.s32.totalorder %s28, 1
      %p156 = por %p154, %p155
      %p158 = scmp.ne.s32.totalorder %s143, %s157
      %p159 = scmp.eq.s32.totalorder %s28, 0
      %p160 = por %p158, %p159
      %s162 = sadd.s32 %s161, 1
      %p165 = scmp.eq.s32.totalorder %s22, 1
      %p166 = scmp.ne.s32.totalorder %s161, %s163
      %p167 = scmp.eq.s32.totalorder %s22, 0
      %p168 = por %p166, %p167
      %p169 = scmp.ne.s32.totalorder %s161, %s163
      %p170 = scmp.eq.s32.totalorder %s27, 1
      %p171 = por %p169, %p170
      %p172 = scmp.ne.s32.totalorder %s163, %s164
      %p173 = scmp.eq.s32.totalorder %s27, 0
      %p174 = por %p172, %p173
      %p175 = scmp.ne.s32.totalorder %s163, %s164
      %p176 = scmp.eq.s32.totalorder %s28, 1
      %p177 = por %p175, %p176
      %p179 = scmp.ne.s32.totalorder %s164, %s178
      %p180 = scmp.eq.s32.totalorder %s28, 0
      %p181 = por %p179, %p180
      %s183 = sadd.s32 %s182, 1
      %p186 = scmp.eq.s32.totalorder %s22, 1
      %p187 = scmp.ne.s32.totalorder %s182, %s184
      %p188 = scmp.eq.s32.totalorder %s22, 0
      %p189 = por %p187, %p188
      %p190 = scmp.ne.s32.totalorder %s182, %s184
      %p191 = scmp.eq.s32.totalorder %s27, 1
      %p192 = por %p190, %p191
      %p193 = scmp.ne.s32.totalorder %s184, %s185
      %p194 = scmp.eq.s32.totalorder %s27, 0
      %p195 = por %p193, %p194
      %p196 = scmp.ne.s32.totalorder %s184, %s185
      %p197 = scmp.eq.s32.totalorder %s28, 1
      %p198 = por %p196, %p197
      %p200 = scmp.ne.s32.totalorder %s185, %s199
      %p201 = scmp.eq.s32.totalorder %s28, 0
      %p202 = por %p200, %p201
      %s203 = ssub.s32 %s22, %s29
      %p204 = scmp.eq.s32.totalorder %s203, 0
      %s206 = sadd.s32 %s205, 1
      %s207 = scalar_select %p204, %s205, %s206
      %p210 = pneg %p204
      %p211 = scmp.eq.s32.totalorder %s22, 1
      %p212 = por %p210, %p211
      %p213 = scmp.ne.s32.totalorder %s205, %s208
      %p214 = scmp.eq.s32.totalorder %s22, 0
      %p215 = por %p213, %p214
      %p216 = scmp.ne.s32.totalorder %s205, %s208
      %p217 = scmp.eq.s32.totalorder %s27, 1
      %p218 = por %p216, %p217
      %p219 = scmp.ne.s32.totalorder %s208, %s209
      %p220 = scmp.eq.s32.totalorder %s27, 0
      %p221 = por %p219, %p220
      %p222 = scmp.ne.s32.totalorder %s208, %s209
      %p223 = scmp.eq.s32.totalorder %s28, 1
      %p224 = por %p222, %p223
      %p226 = scmp.ne.s32.totalorder %s209, %s225
      %p227 = scmp.eq.s32.totalorder %s28, 0
      %p228 = por %p226, %p227
      %p229 = scmp.le.s32.totalorder 1, %s22
      %p230 = scmp.lt.s32.totalorder %s22, 3
      %p231 = pnand %p229, %p230
      %p232 = pneg %p231
      // Predicated region
      $region9: #{tpu_custom_call.1} parent=5 // pred_check
        _
      $region10: #{tpu_custom_call.1} parent=5 // pred_check_branch
        %234 = sbr.rel (%p231) target = $region12
      $region11: #{tpu_custom_call.1} parent=5 // pred_region
        %s235 = ssub.s32 %s22, 1
        // Predicated region
        $region13: #{tpu_custom_call.1} parent=11 // pred_check
          %p236 = pneg %p69
        $region14: #{tpu_custom_call.1} parent=11 // pred_check_branch
          %238 = sbr.rel (%p236) target = $region16
        $region15: #{tpu_custom_call.1} parent=11 // pred_region
          _
        $region16: #{tpu_custom_call.1} parent=11 // pred_fallthru
          _
        // Predicated region
        $region17: #{tpu_custom_call.1} parent=11 // pred_check
          %p239 = pneg %p90
        $region18: #{tpu_custom_call.1} parent=11 // pred_check_branch
          %241 = sbr.rel (%p239) target = $region20
        $region19: #{tpu_custom_call.1} parent=11 // pred_region
          %s243 = ssub.s32 2048, 2048
          %244 = vsyncadd [#allocation6], %s243
          %s245 = sshll.u32 [#allocation5], 4
          %s246 = int_to_ptr.vmem [resolvable:$true] %s245
          %251 = dma.hbm_to_vmem [thread:$0]  %s2, 2048, %s246, [#allocation6], 128, 128, 8
        $region20: #{tpu_custom_call.1} parent=11 // pred_fallthru
          _
        // Predicated region
        $region21: #{tpu_custom_call.1} parent=11 // pred_check
          %p252 = pneg %p111
        $region22: #{tpu_custom_call.1} parent=11 // pred_check_branch
          %254 = sbr.rel (%p252) target = $region24
        $region23: #{tpu_custom_call.1} parent=11 // pred_region
          _
        $region24: #{tpu_custom_call.1} parent=11 // pred_fallthru
          _
        // Predicated region
        $region25: #{tpu_custom_call.1} parent=11 // pred_check
          %p255 = pneg %p132
        $region26: #{tpu_custom_call.1} parent=11 // pred_check_branch
          %257 = sbr.rel (%p255) target = $region28
        $region27: #{tpu_custom_call.1} parent=11 // pred_region
          %s259 = ssub.s32 1024, 1024
          %260 = vsyncadd [#allocation6], %s259
          %s261 = sshll.u32 [#allocation7], 4
          %s262 = int_to_ptr.vmem [resolvable:$true] %s261
          %267 = dma.hbm_to_vmem [thread:$0]  %s4, 1024, %s262, [#allocation6], 64, 64, 4
        $region28: #{tpu_custom_call.1} parent=11 // pred_fallthru
          _
        // Predicated region
        $region29: #{tpu_custom_call.1} parent=11 // pred_check
          %p268 = pneg %p153
        $region30: #{tpu_custom_call.1} parent=11 // pred_check_branch
          %270 = sbr.rel (%p268) target = $region32
        $region31: #{tpu_custom_call.1} parent=11 // pred_region
          %s272 = ssub.s32 1024, 1024
          %273 = vsyncadd [#allocation9], %s272
          %s274 = sshll.u32 [#allocation8], 4
          %s275 = int_to_ptr.vmem [resolvable:$true] %s274
          %280 = dma.hbm_to_vmem [thread:$0]  %s5, 1024, %s275, [#allocation9], 64, 64, 4
        $region32: #{tpu_custom_call.1} parent=11 // pred_fallthru
          _
        // Predicated region
        $region33: #{tpu_custom_call.1} parent=11 // pred_check
          %p281 = pneg %p174
        $region34: #{tpu_custom_call.1} parent=11 // pred_check_branch
          %283 = sbr.rel (%p281) target = $region36
        $region35: #{tpu_custom_call.1} parent=11 // pred_region
          _
        $region36: #{tpu_custom_call.1} parent=11 // pred_fallthru
          _
        // Predicated region
        $region37: #{tpu_custom_call.1} parent=11 // pred_check
          %p284 = pneg %p195
        $region38: #{tpu_custom_call.1} parent=11 // pred_check_branch
          %286 = sbr.rel (%p284) target = $region40
        $region39: #{tpu_custom_call.1} parent=11 // pred_region
          _
        $region40: #{tpu_custom_call.1} parent=11 // pred_fallthru
          _
      $region12: #{tpu_custom_call.1} parent=5 // pred_fallthru
        _
      %p287 = scmp.lt.s32.totalorder %s22, 2
      // Predicated region
      $region41: #{tpu_custom_call.1} parent=5 // pred_check
        %p288 = pneg %p287
      $region42: #{tpu_custom_call.1} parent=5 // pred_check_branch
        %290 = sbr.rel (%p288) target = $region44
      $region43: #{tpu_custom_call.1} parent=5 // pred_region
        // Predicated region
        $region45: #{tpu_custom_call.1} parent=43 // pred_check
          %p291 = pneg %p42
        $region46: #{tpu_custom_call.1} parent=43 // pred_check_branch
          %293 = sbr.rel (%p291) target = $region48
        $region47: #{tpu_custom_call.1} parent=43 // pred_region
          %s294 = sand.u32 %s32, 1
          %s295 = scalar_lea.sflag [#allocation3], %s294
          %s296 = sand.u32 %s32, 1
          %s297 = smul.addr %s296, 24
          %s298 = scalar_lea.vmem [#allocation2], %s297
          %s299 = smul.u32 3, %s22
          %s301 = ssub.s32 384, 384
          %302 = vsyncadd %s295, %s301
          %s303 = smul.addr %s299, 128
          %s304 = scalar_lea.hbm %s0, %s303
          %s305 = sshll.u32 %s298, 4
          %s306 = int_to_ptr.vmem [resolvable:$true] %s305
          %311 = dma.hbm_to_vmem [thread:$0]  %s304, 384, %s306, %s295, 128, 128, 8
        $region48: #{tpu_custom_call.1} parent=43 // pred_fallthru
          _
      $region44: #{tpu_custom_call.1} parent=5 // pred_fallthru
        _
      %p312 = scmp.le.s32.totalorder 1, %s22
      %p313 = scmp.lt.s32.totalorder %s22, 3
      %p314 = pnand %p312, %p313
      %p315 = pneg %p314
      // Predicated region
      $region49: #{tpu_custom_call.1} parent=5 // pred_check
        _
      $region50: #{tpu_custom_call.1} parent=5 // pred_check_branch
        %317 = sbr.rel (%p314) target = $region52
      $region51: #{tpu_custom_call.1} parent=5 // pred_region
        %s318 = ssub.s32 %s22, 1
        %s319 = sand.u32 %s35, 1
        %s320 = scalar_lea.sflag [#allocation3], %s319
        %s321 = sand.u32 %s35, 1
        %s322 = smul.addr %s321, 24
        %s323 = scalar_lea.vmem [#allocation2], %s322
        // Predicated region
        $region53: #{tpu_custom_call.1} parent=51 // pred_check
          %p324 = pneg %p48
        $region54: #{tpu_custom_call.1} parent=51 // pred_check_branch
          %326 = sbr.rel (%p324) target = $region56
        $region55: #{tpu_custom_call.1} parent=51 // pred_region
          %327 = dma.done %s320, 384
        $region56: #{tpu_custom_call.1} parent=51 // pred_fallthru
          _
        // Predicated region
        $region57: #{tpu_custom_call.1} parent=51 // pred_check
          %p328 = pneg %p90
        $region58: #{tpu_custom_call.1} parent=51 // pred_check_branch
          %330 = sbr.rel (%p328) target = $region60
        $region59: #{tpu_custom_call.1} parent=51 // pred_region
          %331 = dma.done [#allocation6], 2048
        $region60: #{tpu_custom_call.1} parent=51 // pred_fallthru
          _
        // Predicated region
        $region61: #{tpu_custom_call.1} parent=51 // pred_check
          %p332 = pneg %p132
        $region62: #{tpu_custom_call.1} parent=51 // pred_check_branch
          %334 = sbr.rel (%p332) target = $region64
        $region63: #{tpu_custom_call.1} parent=51 // pred_region
          %335 = dma.done [#allocation6], 1024
        $region64: #{tpu_custom_call.1} parent=51 // pred_fallthru
          _
        // Predicated region
        $region65: #{tpu_custom_call.1} parent=51 // pred_check
          %p336 = pneg %p153
        $region66: #{tpu_custom_call.1} parent=51 // pred_check_branch
          %338 = sbr.rel (%p336) target = $region68
        $region67: #{tpu_custom_call.1} parent=51 // pred_region
          %339 = dma.done [#allocation9], 1024
        $region68: #{tpu_custom_call.1} parent=51 // pred_fallthru
          _
        %s340 = sand.u32 %s35, 1
        %s341 = scalar_lea.sflag [#allocation3], %s340
        %s342 = sand.u32 %s35, 1
        %s343 = smul.addr %s342, 24
        %s344 = scalar_lea.vmem [#allocation2], %s343
        %p345 = pneg %p48
        %p346 = pneg %p45
        %p347 = pneg %p69
        %p348 = pneg %p66
        %p349 = pneg %p90
        %p350 = pneg %p87
        %p351 = pneg %p111
        %p352 = pneg %p108
        %p353 = pneg %p132
        %p354 = pneg %p129
        %p355 = pneg %p153
        %p356 = pneg %p150
        %p357 = pneg %p174
        %p358 = pneg %p171
        %p359 = pneg %p195
        %p360 = pneg %p192
        %p361 = pneg %p221
        %p362 = pneg %p218
        %s363 = sand.u32 %s208, 1
        %s364 = scalar_lea.sflag [#allocation4], %s363
        %s365 = sand.u32 %s208, 1
        %s366 = smul.addr %s365, 24
        %s367 = scalar_lea.vmem [#allocation10], %s366
        %s368 = smul.u32 3, %s27
        %s369 = smul.u32 3, %s27
        %v371 = vld [vmem:[%s323] sm:$0xff]
        %v372 = vld [vmem:[%s323 + $0x8] sm:$0xff]
        %v373 = vld [vmem:[%s323 + $0x10] sm:$0xff]
        %v374 = vld [vmem:[%s1] sm:$0x1]
        %v376 = vlaneseq
        %v377 = vshrl.u32 %v376, 7
        %v378 = vsub.s32 0, %v377
        %v379 = vrot.slane %v374, %v378
        %v381 = vmul.f32 %v379, %v371
        %v382 = vmul.f32 %v379, %v372
        %v383 = vmul.f32 %v379, %v373
        %v384 = vld [vmem:[#allocation5] sm:$0xff]
        %v385 = vld [vmem:[#allocation5 + $0x8] sm:$0xff]
        %v386 = vld [vmem:[#allocation5 + $0x10] sm:$0xff]
        %v387 = vld [vmem:[#allocation5 + $0x18] sm:$0xff]
        %v388 = vld [vmem:[#allocation5 + $0x20] sm:$0xff]
        %v389 = vld [vmem:[#allocation5 + $0x28] sm:$0xff]
        %v390 = vld [vmem:[#allocation5 + $0x30] sm:$0xff]
        %v391 = vld [vmem:[#allocation5 + $0x38] sm:$0xff]
        %v392 = vld [vmem:[#allocation5 + $0x40] sm:$0xff]
        %v393 = vld [vmem:[#allocation5 + $0x48] sm:$0xff]
        %v394 = vld [vmem:[#allocation5 + $0x50] sm:$0xff]
        %v395 = vld [vmem:[#allocation5 + $0x58] sm:$0xff]
        %v396 = vld [vmem:[#allocation5 + $0x60] sm:$0xff]
        %v397 = vld [vmem:[#allocation5 + $0x68] sm:$0xff]
        %v398 = vld [vmem:[#allocation5 + $0x70] sm:$0xff]
        %v399 = vld [vmem:[#allocation5 + $0x78] sm:$0xff]
        %v400 = vpack.c.bf16 %v382, %v381
        %v401 = vpack.c.bf16 %v383, %v383
        %v402 = vld [vmem:[%s3] sm:$0x3]
        %v404 = vlaneseq
        %v405 = vshrl.u32 %v404, 7
        %v406 = vsub.s32 0, %v405
        %v407 = vrot.slane %v402, %v406
        %v408 = vlaneseq
        %v409 = vshrl.u32 %v408, 7
        %v410 = vsub.s32 1, %v409
        %v411 = vrot.slane %v402, %v410
        %v430 = vunpack.c.l.b16 %v384
        %v431 = vunpack.c.h.b16 %v384
        %v432 = vunpack.c.l.b16 %v385
        %v433 = vunpack.c.h.b16 %v385
        %v434 = vunpack.c.l.b16 %v386
        %v435 = vunpack.c.h.b16 %v386
        %v436 = vunpack.c.l.b16 %v387
        %v437 = vunpack.c.h.b16 %v387
        %v438 = vunpack.c.l.b16 %v388
        %v439 = vunpack.c.h.b16 %v388
        %v440 = vunpack.c.l.b16 %v389
        %v441 = vunpack.c.h.b16 %v389
        %v442 = vunpack.c.l.b16 %v390
        %v443 = vunpack.c.h.b16 %v390
        %v444 = vunpack.c.l.b16 %v391
        %v445 = vunpack.c.h.b16 %v391
        %v446 = vunpack.c.l.b16 %v392
        %v447 = vunpack.c.h.b16 %v392
        %v448 = vunpack.c.l.b16 %v393
        %v449 = vunpack.c.h.b16 %v393
        %v450 = vunpack.c.l.b16 %v394
        %v451 = vunpack.c.h.b16 %v394
        %v452 = vunpack.c.l.b16 %v395
        %v453 = vunpack.c.h.b16 %v395
        %v454 = vunpack.c.l.b16 %v396
        %v455 = vunpack.c.h.b16 %v396
        %v456 = vunpack.c.l.b16 %v397
        %v457 = vunpack.c.h.b16 %v397
        %v458 = vunpack.c.l.b16 %v398
        %v459 = vunpack.c.h.b16 %v398
        %v460 = vunpack.c.l.b16 %v399
        %v461 = vunpack.c.h.b16 %v399
        %v462 = vpack.c.b16 %v432, %v430
        %v463 = vpack.c.b16 %v433, %v431
        %v464 = vpack.c.b16 %v436, %v434
        %v465 = vpack.c.b16 %v437, %v435
        %v466 = vpack.c.b16 %v440, %v438
        %v467 = vpack.c.b16 %v441, %v439
        %v468 = vpack.c.b16 %v444, %v442
        %v469 = vpack.c.b16 %v445, %v443
        %v470 = vpack.c.b16 %v448, %v446
        %v471 = vpack.c.b16 %v449, %v447
        %v472 = vpack.c.b16 %v452, %v450
        %v473 = vpack.c.b16 %v453, %v451
        %v474 = vpack.c.b16 %v456, %v454
        %v475 = vpack.c.b16 %v457, %v455
        %v476 = vpack.c.b16 %v460, %v458
        %v477 = vpack.c.b16 %v461, %v459
        %494 = vmatprep.subr.bf16.mxu0 %v463
        %495 = vmatpush1.bf16.msra.mxu0 %v462
        %496 = vmatprep.subr.bf16.mxu0 %v465
        %497 = vmatpush1.bf16.msra.mxu0 %v464
        %498 = vmatprep.subr.bf16.mxu0 %v467
        %499 = vmatpush1.bf16.msra.mxu0 %v466
        %500 = vmatprep.subr.bf16.mxu0 %v469
        %501 = vmatpush1.bf16.msra.mxu0 %v468
        %502 = vmatprep.subr.bf16.mxu0 %v471
        %503 = vmatpush1.bf16.msra.mxu0 %v470
        %504 = vmatprep.subr.bf16.mxu0 %v473
        %505 = vmatpush1.bf16.msra.mxu0 %v472
        %506 = vmatprep.subr.bf16.mxu0 %v475
        %507 = vmatpush1.bf16.msra.mxu0 %v474
        %508 = vmatprep.subr.bf16.mxu0 %v477
        %509 = vmatpush1.bf16.msra.mxu0 %v476
        %510 = vmatprep.subr.bf16.mxu0 0
        %511 = vmatpush1.bf16.msra.mxu0 0
        %512 = vmatprep.subr.bf16.mxu0 0
        %513 = vmatpush1.bf16.msra.mxu0 0
        %514 = vmatprep.subr.bf16.mxu0 0
        %515 = vmatpush1.bf16.msra.mxu0 0
        %516 = vmatprep.subr.bf16.mxu0 0
        %517 = vmatpush1.bf16.msra.mxu0 0
        %518 = vmatprep.subr.bf16.mxu0 0
        %519 = vmatpush1.bf16.msra.mxu0 0
        %520 = vmatprep.subr.bf16.mxu0 0
        %521 = vmatpush1.bf16.msra.mxu0 0
        %522 = vmatprep.subr.bf16.mxu0 0
        %523 = vmatpush1.bf16.msra.mxu0 0
        %524 = vmatprep.subr.bf16.mxu0 0
        %525 = vmatpush1.bf16.msra.mxu0 0
        %526 = vmatprep.mubr.bf16.mxu0 0
        %527 = vmatmul.mubr.bf16.gmra.mrb[0].mxu0 %v400
        %v528 = vpop.f32.mrb[0].mxu0
        %v529 = vadd.f32 %v407, %v528
        %v530 = vpop.f32.mrb[0].mxu0
        %v531 = vadd.f32 %v411, %v530
        %v532 = vpop.f32.mrb[0].mxu0
        %v533 = vadd.f32 %v407, %v532
        %v534 = vpop.f32.mrb[0].mxu0
        %v535 = vadd.f32 %v411, %v534
        %536 = vmatprep.mubr.bf16.mxu0 0
        %537 = vmatmul.mubr.bf16.gmra.mrb[0].mxu0 %v401
        %v538 = vpop.f32.mrb[0].mxu0
        %v539 = vadd.f32 %v407, %v538
        %v540 = vpop.f32.mrb[0].mxu0
        %v541 = vadd.f32 %v411, %v540
        %v542 = vpop.f32.mrb[0].mxu0
        %v543 = vpop.f32.mrb[0].mxu0
        %544 = vdwg.mxu0
        %v545 = vtanh.pop %v529
        %v546 = vtanh.pop %v531
        %v547 = vtanh.pop %v533
        %v548 = vtanh.pop %v535
        %v549 = vtanh.pop %v539
        %v550 = vtanh.pop %v541
        %v551 = vpack.c.bf16 %v547, %v545
        %v552 = vpack.c.bf16 %v549, %v549
        %v553 = vld [vmem:[#allocation7] sm:$0xf]
        %v554 = vld [vmem:[#allocation7 + $0x4] sm:$0xf]
        %v555 = vld [vmem:[#allocation7 + $0x8] sm:$0xf]
        %v556 = vld [vmem:[#allocation7 + $0xc] sm:$0xf]
        %v557 = vld [vmem:[#allocation7 + $0x10] sm:$0xf]
        %v558 = vld [vmem:[#allocation7 + $0x14] sm:$0xf]
        %v559 = vld [vmem:[#allocation7 + $0x18] sm:$0xf]
        %v560 = vld [vmem:[#allocation7 + $0x1c] sm:$0xf]
        %v561 = vld [vmem:[#allocation7 + $0x20] sm:$0xf]
        %v562 = vld [vmem:[#allocation7 + $0x24] sm:$0xf]
        %v563 = vld [vmem:[#allocation7 + $0x28] sm:$0xf]
        %v564 = vld [vmem:[#allocation7 + $0x2c] sm:$0xf]
        %v565 = vld [vmem:[#allocation7 + $0x30] sm:$0xf]
        %v566 = vld [vmem:[#allocation7 + $0x34] sm:$0xf]
        %v567 = vld [vmem:[#allocation7 + $0x38] sm:$0xf]
        %v568 = vld [vmem:[#allocation7 + $0x3c] sm:$0xf]
        %v569 = vld [vmem:[%s6] sm:$0x1]
        %v571 = vlaneseq
        %v572 = vshrl.u32 %v571, 7
        %v573 = vsub.s32 0, %v572
        %v574 = vrot.slane %v569, %v573
        %v592 = vunpack.c.l.b16 %v553
        %v593 = vunpack.c.l.b16 %v554
        %v594 = vunpack.c.l.b16 %v555
        %v595 = vunpack.c.l.b16 %v556
        %v596 = vunpack.c.l.b16 %v557
        %v597 = vunpack.c.l.b16 %v558
        %v598 = vunpack.c.l.b16 %v559
        %v599 = vunpack.c.l.b16 %v560
        %v600 = vunpack.c.l.b16 %v561
        %v601 = vunpack.c.l.b16 %v562
        %v602 = vunpack.c.l.b16 %v563
        %v603 = vunpack.c.l.b16 %v564
        %v604 = vunpack.c.l.b16 %v565
        %v605 = vunpack.c.l.b16 %v566
        %v606 = vunpack.c.l.b16 %v567
        %v607 = vunpack.c.l.b16 %v568
        %v608 = vpack.c.b16 %v593, %v592
        %v609 = vpack.c.b16 %v595, %v594
        %v610 = vpack.c.b16 %v597, %v596
        %v611 = vpack.c.b16 %v599, %v598
        %v612 = vpack.c.b16 %v601, %v600
        %v613 = vpack.c.b16 %v603, %v602
        %v614 = vpack.c.b16 %v605, %v604
        %v615 = vpack.c.b16 %v607, %v606
        %624 = vmatprep.subr.bf16.mxu0 0
        %625 = vmatpush1.bf16.msra.mxu0 %v608
        %626 = vmatprep.subr.bf16.mxu0 0
        %627 = vmatpush1.bf16.msra.mxu0 %v609
        %628 = vmatprep.subr.bf16.mxu0 0
        %629 = vmatpush1.bf16.msra.mxu0 %v610
        %630 = vmatprep.subr.bf16.mxu0 0
        %631 = vmatpush1.bf16.msra.mxu0 %v611
        %632 = vmatprep.subr.bf16.mxu0 0
        %633 = vmatpush1.bf16.msra.mxu0 %v612
        %634 = vmatprep.subr.bf16.mxu0 0
        %635 = vmatpush1.bf16.msra.mxu0 %v613
        %636 = vmatprep.subr.bf16.mxu0 0
        %637 = vmatpush1.bf16.msra.mxu0 %v614
        %638 = vmatprep.subr.bf16.mxu0 0
        %639 = vmatpush1.bf16.msra.mxu0 %v615
        %640 = vmatprep.subr.bf16.mxu0 0
        %641 = vmatpush1.bf16.msra.mxu0 0
        %642 = vmatprep.subr.bf16.mxu0 0
        %643 = vmatpush1.bf16.msra.mxu0 0
        %644 = vmatprep.subr.bf16.mxu0 0
        %645 = vmatpush1.bf16.msra.mxu0 0
        %646 = vmatprep.subr.bf16.mxu0 0
        %647 = vmatpush1.bf16.msra.mxu0 0
        %648 = vmatprep.subr.bf16.mxu0 0
        %649 = vmatpush1.bf16.msra.mxu0 0
        %650 = vmatprep.subr.bf16.mxu0 0
        %651 = vmatpush1.bf16.msra.mxu0 0
        %652 = vmatprep.subr.bf16.mxu0 0
        %653 = vmatpush1.bf16.msra.mxu0 0
        %654 = vmatprep.subr.bf16.mxu0 0
        %655 = vmatpush1.bf16.msra.mxu0 0
        %656 = vmatprep.mubr.bf16.mxu0 0
        %657 = vmatmul.mubr.bf16.gmra.mrb[0].mxu0 %v551
        %v658 = vpop.f32.mrb[0].mxu0
        %v659 = vadd.f32 %v574, %v658
        %v660 = vpop.f32.mrb[0].mxu0
        %v661 = vpop.f32.mrb[0].mxu0
        %v662 = vadd.f32 %v574, %v661
        %v663 = vpop.f32.mrb[0].mxu0
        %664 = vmatprep.mubr.bf16.mxu0 0
        %665 = vmatmul.mubr.bf16.gmra.mrb[0].mxu0 %v552
        %v666 = vpop.f32.mrb[0].mxu0
        %v667 = vadd.f32 %v574, %v666
        %v668 = vpop.f32.mrb[0].mxu0
        %v669 = vpop.f32.mrb[0].mxu0
        %v670 = vpop.f32.mrb[0].mxu0
        %671 = vdwg.mxu0
        %v672 = vpack.c.bf16 %v548, %v546
        %v673 = vpack.c.bf16 %v550, %v550
        %v674 = vld [vmem:[#allocation8] sm:$0xf]
        %v675 = vld [vmem:[#allocation8 + $0x4] sm:$0xf]
        %v676 = vld [vmem:[#allocation8 + $0x8] sm:$0xf]
        %v677 = vld [vmem:[#allocation8 + $0xc] sm:$0xf]
        %v678 = vld [vmem:[#allocation8 + $0x10] sm:$0xf]
        %v679 = vld [vmem:[#allocation8 + $0x14] sm:$0xf]
        %v680 = vld [vmem:[#allocation8 + $0x18] sm:$0xf]
        %v681 = vld [vmem:[#allocation8 + $0x1c] sm:$0xf]
        %v682 = vld [vmem:[#allocation8 + $0x20] sm:$0xf]
        %v683 = vld [vmem:[#allocation8 + $0x24] sm:$0xf]
        %v684 = vld [vmem:[#allocation8 + $0x28] sm:$0xf]
        %v685 = vld [vmem:[#allocation8 + $0x2c] sm:$0xf]
        %v686 = vld [vmem:[#allocation8 + $0x30] sm:$0xf]
        %v687 = vld [vmem:[#allocation8 + $0x34] sm:$0xf]
        %v688 = vld [vmem:[#allocation8 + $0x38] sm:$0xf]
        %v689 = vld [vmem:[#allocation8 + $0x3c] sm:$0xf]
        %v690 = vld [vmem:[%s7] sm:$0x1]
        %v692 = vlaneseq
        %v693 = vshrl.u32 %v692, 7
        %v694 = vsub.s32 0, %v693
        %v695 = vrot.slane %v690, %v694
        %v713 = vunpack.c.l.b16 %v674
        %v714 = vunpack.c.l.b16 %v675
        %v715 = vunpack.c.l.b16 %v676
        %v716 = vunpack.c.l.b16 %v677
        %v717 = vunpack.c.l.b16 %v678
        %v718 = vunpack.c.l.b16 %v679
        %v719 = vunpack.c.l.b16 %v680
        %v720 = vunpack.c.l.b16 %v681
        %v721 = vunpack.c.l.b16 %v682
        %v722 = vunpack.c.l.b16 %v683
        %v723 = vunpack.c.l.b16 %v684
        %v724 = vunpack.c.l.b16 %v685
        %v725 = vunpack.c.l.b16 %v686
        %v726 = vunpack.c.l.b16 %v687
        %v727 = vunpack.c.l.b16 %v688
        %v728 = vunpack.c.l.b16 %v689
        %v729 = vpack.c.b16 %v714, %v713
        %v730 = vpack.c.b16 %v716, %v715
        %v731 = vpack.c.b16 %v718, %v717
        %v732 = vpack.c.b16 %v720, %v719
        %v733 = vpack.c.b16 %v722, %v721
        %v734 = vpack.c.b16 %v724, %v723
        %v735 = vpack.c.b16 %v726, %v725
        %v736 = vpack.c.b16 %v728, %v727
        %745 = vmatprep.subr.bf16.mxu0 0
        %746 = vmatpush1.bf16.msra.mxu0 %v729
        %747 = vmatprep.subr.bf16.mxu0 0
        %748 = vmatpush1.bf16.msra.mxu0 %v730
        %749 = vmatprep.subr.bf16.mxu0 0
        %750 = vmatpush1.bf16.msra.mxu0 %v731
        %751 = vmatprep.subr.bf16.mxu0 0
        %752 = vmatpush1.bf16.msra.mxu0 %v732
        %753 = vmatprep.subr.bf16.mxu0 0
        %754 = vmatpush1.bf16.msra.mxu0 %v733
        %755 = vmatprep.subr.bf16.mxu0 0
        %756 = vmatpush1.bf16.msra.mxu0 %v734
        %757 = vmatprep.subr.bf16.mxu0 0
        %758 = vmatpush1.bf16.msra.mxu0 %v735
        %759 = vmatprep.subr.bf16.mxu0 0
        %760 = vmatpush1.bf16.msra.mxu0 %v736
        %761 = vmatprep.subr.bf16.mxu0 0
        %762 = vmatpush1.bf16.msra.mxu0 0
        %763 = vmatprep.subr.bf16.mxu0 0
        %764 = vmatpush1.bf16.msra.mxu0 0
        %765 = vmatprep.subr.bf16.mxu0 0
        %766 = vmatpush1.bf16.msra.mxu0 0
        %767 = vmatprep.subr.bf16.mxu0 0
        %768 = vmatpush1.bf16.msra.mxu0 0
        %769 = vmatprep.subr.bf16.mxu0 0
        %770 = vmatpush1.bf16.msra.mxu0 0
        %771 = vmatprep.subr.bf16.mxu0 0
        %772 = vmatpush1.bf16.msra.mxu0 0
        %773 = vmatprep.subr.bf16.mxu0 0
        %774 = vmatpush1.bf16.msra.mxu0 0
        %775 = vmatprep.subr.bf16.mxu0 0
        %776 = vmatpush1.bf16.msra.mxu0 0
        %777 = vmatprep.mubr.bf16.mxu0 0
        %778 = vmatmul.mubr.bf16.gmra.mrb[0].mxu0 %v672
        %v779 = vpop.f32.mrb[0].mxu0
        %v780 = vadd.f32 %v695, %v779
        %v781 = vpop.f32.mrb[0].mxu0
        %v782 = vpop.f32.mrb[0].mxu0
        %v783 = vadd.f32 %v695, %v782
        %v784 = vpop.f32.mrb[0].mxu0
        %785 = vmatprep.mubr.bf16.mxu0 0
        %786 = vmatmul.mubr.bf16.gmra.mrb[0].mxu0 %v673
        %v787 = vpop.f32.mrb[0].mxu0
        %v788 = vadd.f32 %v695, %v787
        %v789 = vpop.f32.mrb[0].mxu0
        %v790 = vpop.f32.mrb[0].mxu0
        %v791 = vpop.f32.mrb[0].mxu0
        %792 = vdwg.mxu0
        %v793 = vsub.f32 1.0, %v374
        %v794 = vmul.f32 %v659, 1.442695
        %v795 = vpow.pop %v794
        %v796 = vmul.f32 %v662, 1.442695
        %v797 = vpow.pop %v796
        %v798 = vmul.f32 %v667, 1.442695
        %v799 = vpow.pop %v798
        %v800 = vmul.f32 %v795, %v371
        %v801 = vmul.f32 %v797, %v372
        %v802 = vmul.f32 %v799, %v373
        %v803 = vadd.f32 %v800, %v780
        %v804 = vadd.f32 %v801, %v783
        %v805 = vadd.f32 %v802, %v788
        %v807 = vlaneseq
        %v808 = vshrl.u32 %v807, 7
        %v809 = vsub.s32 0, %v808
        %v810 = vrot.slane %v793, %v809
        %v812 = vmul.f32 %v810, %v803
        %v813 = vmul.f32 %v810, %v804
        %v814 = vmul.f32 %v810, %v805
        %v815 = vadd.f32 %v381, %v812
        %v816 = vadd.f32 %v382, %v813
        %v817 = vadd.f32 %v383, %v814
        %v818 = vmul.f32 %v810, %v659
        %v819 = vmul.f32 %v810, %v662
        %v820 = vmul.f32 %v810, %v667
        %821 = vadd.xlane.f32.xlu0 %v818
        %v822 = vpop.xlane.xlu0 %821
        %823 = vadd.xlane.f32.xlu0 %v819
        %v824 = vpop.xlane.xlu0 %823
        %825 = vadd.xlane.f32.xlu0 %v820
        %v826 = vpop.xlane.xlu0 %825
        %v827 = vlaneseq
        %v828 = vand.u32 %v827, 127
        %vm829 = vcmp.eq.s32.totalorder %v828, 16
        %v830 = vsel %vm829, %v822, %v815
        %v831 = vsel %vm829, %v824, %v816
        %v832 = vsel %vm829, %v826, %v817
        %833 = vst [vmem:[%s367] sm:$0xff] %v830
        %834 = vst [vmem:[%s367 + $0x8] sm:$0xff] %v831
        %835 = vst [vmem:[%s367 + $0x10] sm:$0xff] %v832
        %s836 = sand.u32 %s208, 1
        %s837 = scalar_lea.sflag [#allocation4], %s836
        %s838 = sand.u32 %s208, 1
        %s839 = smul.addr %s838, 24
        %s840 = scalar_lea.vmem [#allocation10], %s839
        // Predicated region
        $region69: #{tpu_custom_call.1} parent=51 // pred_check
          %p841 = pneg %p218
        $region70: #{tpu_custom_call.1} parent=51 // pred_check_branch
          %843 = sbr.rel (%p841) target = $region72
        $region71: #{tpu_custom_call.1} parent=51 // pred_region
          %s844 = smul.u32 3, %s27
          %s846 = ssub.s32 384, 384
          %847 = vsyncadd %s837, %s846
          %s848 = smul.addr %s844, 128
          %s849 = scalar_lea.hbm %s8, %s848
          %s850 = sshll.u32 %s840, 4
          %s851 = int_to_ptr.vmem [resolvable:$true] %s850
          %856 = dma.vmem_to_hbm [thread:$0]  %s851, 384, %s849, %s837, 128, 128, 8
        $region72: #{tpu_custom_call.1} parent=51 // pred_fallthru
          _
      $region52: #{tpu_custom_call.1} parent=5 // pred_fallthru
        _
      %p857 = scmp.le.s32.totalorder 2, %s22
      // Predicated region
      $region73: #{tpu_custom_call.1} parent=5 // pred_check
        %p858 = pneg %p857
      $region74: #{tpu_custom_call.1} parent=5 // pred_check_branch
        %860 = sbr.rel (%p858) target = $region76
      $region75: #{tpu_custom_call.1} parent=5 // pred_region
        %s861 = ssub.s32 %s22, 2
        // Predicated region
        $region77: #{tpu_custom_call.1} parent=75 // pred_check
          %p862 = pneg %p224
        $region78: #{tpu_custom_call.1} parent=75 // pred_check_branch
          %864 = sbr.rel (%p862) target = $region80
        $region79: #{tpu_custom_call.1} parent=75 // pred_region
          %s865 = sand.u32 %s209, 1
          %s866 = scalar_lea.sflag [#allocation4], %s865
          %s867 = sand.u32 %s209, 1
          %s868 = smul.addr %s867, 24
          %s869 = scalar_lea.vmem [#allocation10], %s868
          %870 = dma.done %s866, 384
        $region80: #{tpu_custom_call.1} parent=75 // pred_fallthru
          _
      $region76: #{tpu_custom_call.1} parent=5 // pred_fallthru
        _
    $region6: #{tpu_custom_call.1} parent=1 // loop_footer
      %s26 = sadd.s32 1, %s22
    $region7: #{tpu_custom_call.1} parent=1 // loop_footer_branch
      %21 = sbr.rel target = $region3
    $region8: #{tpu_custom_call.1} parent=1 // loop_exit
      _
    %871 = vsyncpa [#allocation3], 1
    %s872 = scalar_lea.sflag [#allocation3], 1
    %873 = vsyncpa %s872, 1
    %874 = vsyncpa [#allocation6], 1
    %875 = vsyncpa [#allocation9], 1
    %876 = vsyncpa [#allocation4], 1
    %s877 = scalar_lea.sflag [#allocation4], 1
    %878 = vsyncpa %s877, 1

// kernel: tpu_custom_call.1
$region0: #{tpu_custom_call.1}
  #allocation0 [shape = 'u32[]', space=smem, size = 0x4, offset = 0x4, fixed_abs, tag = 'smem constant byte address 0x4 - core index']
  #allocation1 [shape = 'u32[144,128]{1,0:T(1,128)}', space=vmem, size = 0x12000, scoped, tag = 'internal scratch']
  %s0 = inlined_call_operand.hbm [shape: f32[48,128], index: 0, kind: input, shape index: {}]
  %s1 = inlined_call_operand.vmem [shape: f32[1,128], index: 1, kind: input, shape index: {}]
  %s2 = inlined_call_operand.hbm [shape: bf16[128,256], index: 2, kind: input, shape index: {}]
  %s3 = inlined_call_operand.vmem [shape: f32[1,256], index: 3, kind: input, shape index: {}]
  %s4 = inlined_call_operand.hbm [shape: bf16[128,128], index: 4, kind: input, shape index: {}]
  %s5 = inlined_call_operand.hbm [shape: bf16[128,128], index: 5, kind: input, shape index: {}]
  %s6 = inlined_call_operand.vmem [shape: f32[1,128], index: 6, kind: input, shape index: {}]
  %s7 = inlined_call_operand.vmem [shape: f32[1,128], index: 7, kind: input, shape index: {}]
  %s8 = inlined_call_operand.hbm [shape: f32[48,128], index: 8, kind: output, shape index: {}]
  %s9 = sld [smem:[#allocation0]]
  $region81: #{tpu_custom_call.1} parent=0
    _
  %s11 = ssub.s32 1, %s9
  %s12 = scalar_select 0, %s11, %s9
  $region1: #{tpu_custom_call.1} parent=0
    #allocation2 [shape = 'u8[24576]{0}', space=vmem, size = 0x6000, scoped, tag = 'input window, operand 0']
    #allocation3 [shape = 's32[2]{0}', space=sflag, size = 0x8, scoped, tag = 'scoped memory for tpu_custom_call.1']
    #allocation4 [shape = 's32[2]{0}', space=sflag, size = 0x8, scoped, tag = 'scoped memory for tpu_custom_call.1']
    #allocation5 [shape = 'u8[65536]{0}', space=vmem, size = 0x10000, scoped, tag = 'input window, operand 2, single buffered']
    #allocation6 [shape = 's32[1]{0}', space=sflag, size = 0x4, scoped, tag = 'scoped memory for tpu_custom_call.1']
    #allocation7 [shape = 'u8[32768]{0}', space=vmem, size = 0x8000, scoped, tag = 'input window, operand 4, single buffered']
    #allocation8 [shape = 'u8[32768]{0}', space=vmem, size = 0x8000, scoped, tag = 'input window, operand 5, single buffered']
    #allocation9 [shape = 's32[1]{0}', space=sflag, size = 0x4, scoped, tag = 'scoped memory for tpu_custom_call.1']
    #allocation10 [shape = 'u8[24576]{0}', space=vmem, size = 0x6000, scoped, tag = 'output window, operand 0']
    %13 = vsyncpa [#allocation3], 0
    %s14 = scalar_lea.sflag [#allocation3], 1
    %15 = vsyncpa %s14, 0
    %16 = vsyncpa [#allocation6], 0
    %17 = vsyncpa [#allocation9], 0
    %18 = vsyncpa [#allocation4], 0
    %s19 = scalar_lea.sflag [#allocation4], 1
    %20 = vsyncpa %s19, 0
    loop: start=0, step=1, limit=4
    $region2: #{tpu_custom_call.1} parent=1 // loop_pre_header
      _
    $region3: #{tpu_custom_call.1} parent=1 // loop_header
      %s22 = sphi 0, %s26
      %p23 = scmp.ge.s32.totalorder %s22, 4
      %s32 = sphi 0, %s34
      %s35 = sphi 0, %s32
      %s36 = sphi 0, %s35
      %s52 = sphi 0, %s36
      %s56 = sphi 0, %s56
      %s58 = sphi 0, %s56
      %s59 = sphi 0, %s58
      %s73 = sphi 0, %s59
      %s77 = sphi 0, %s77
      %s79 = sphi 0, %s77
      %s80 = sphi 0, %s79
      %s94 = sphi 0, %s80
      %s98 = sphi 0, %s98
      %s100 = sphi 0, %s98
      %s101 = sphi 0, %s100
      %s115 = sphi 0, %s101
      %s119 = sphi 0, %s119
      %s121 = sphi 0, %s119
      %s122 = sphi 0, %s121
      %s136 = sphi 0, %s122
      %s140 = sphi 0, %s140
      %s142 = sphi 0, %s140
      %s143 = sphi 0, %s142
      %s157 = sphi 0, %s143
      %s161 = sphi 0, %s161
      %s163 = sphi 0, %s161
      %s164 = sphi 0, %s163
      %s178 = sphi 0, %s164
      %s182 = sphi 0, %s182
      %s184 = sphi 0, %s182
      %s185 = sphi 0, %s184
      %s199 = sphi 0, %s185
      %s205 = sphi 0, %s207
      %s208 = sphi 0, %s205
      %s209 = sphi 0, %s208
      %s225 = sphi 0, %s209
    $region4: #{tpu_custom_call.1} parent=1 // loop_header_branch
      %25 = sbr.rel (%p23) target = $region8
    $region5: #{tpu_custom_call.1} parent=1 // loop_body
      %s27 = ssub.s32 %s22, 1
      %s28 = ssub.s32 %s22, 2
      %s29 = sadd.s32 %s22, 1
      %s30 = ssub.s32 %s22, %s29
      %p31 = scmp.eq.s32.totalorder %s30, 0
      %s33 = sadd.s32 %s32, 1
      %s34 = scalar_select %p31, %s32, %s33
      %p37 = pneg %p31
      %p38 = scmp.eq.s32.totalorder %s22, 1
      %p39 = por %p37, %p38
      %p40 = scmp.ne.s32.totalorder %s32, %s35
      %p41 = scmp.eq.s32.totalorder %s22, 0
      %p42 = por %p40, %p41
      %p43 = scmp.ne.s32.totalorder %s32, %s35
      %p44 = scmp.eq.s32.totalorder %s27, 1
      %p45 = por %p43, %p44
      %p46 = scmp.ne.s32.totalorder %s35, %s36
      %p47 = scmp.eq.s32.totalorder %s27, 0
      %p48 = por %p46, %p47
      %p49 = scmp.ne.s32.totalorder %s35, %s36
      %p50 = scmp.eq.s32.totalorder %s28, 1
      %p51 = por %p49, %p50
      %p53 = scmp.ne.s32.totalorder %s36, %s52
      %p54 = scmp.eq.s32.totalorder %s28, 0
      %p55 = por %p53, %p54
      %s57 = sadd.s32 %s56, 1
      %p60 = scmp.eq.s32.totalorder %s22, 1
      %p61 = scmp.ne.s32.totalorder %s56, %s58
      %p62 = scmp.eq.s32.totalorder %s22, 0
      %p63 = por %p61, %p62
      %p64 = scmp.ne.s32.totalorder %s56, %s58
      %p65 = scmp.eq.s32.totalorder %s27, 1
      %p66 = por %p64, %p65
      %p67 = scmp.ne.s32.totalorder %s58, %s59
      %p68 = scmp.eq.s32.totalorder %s27, 0
      %p69 = por %p67, %p68
      %p70 = scmp.ne.s32.totalorder %s58, %s59
      %p71 = scmp.eq.s32.totalorder %s28, 1
      %p72 = por %p70, %p71
      %p74 = scmp.ne.s32.totalorder %s59, %s73
      %p75 = scmp.eq.s32.totalorder %s28, 0
      %p76 = por %p74, %p75
      %s78 = sadd.s32 %s77, 1
      %p81 = scmp.eq.s32.totalorder %s22, 1
      %p82 = scmp.ne.s32.totalorder %s77, %s79
      %p83 = scmp.eq.s32.totalorder %s22, 0
      %p84 = por %p82, %p83
      %p85 = scmp.ne.s32.totalorder %s77, %s79
      %p86 = scmp.eq.s32.totalorder %s27, 1
      %p87 = por %p85, %p86
      %p88 = scmp.ne.s32.totalorder %s79, %s80
      %p89 = scmp.eq.s32.totalorder %s27, 0
      %p90 = por %p88, %p89
      %p91 = scmp.ne.s32.totalorder %s79, %s80
      %p92 = scmp.eq.s32.totalorder %s28, 1
      %p93 = por %p91, %p92
      %p95 = scmp.ne.s32.totalorder %s80, %s94
      %p96 = scmp.eq.s32.totalorder %s28, 0
      %p97 = por %p95, %p96
      %s99 = sadd.s32 %s98, 1
      %p102 = scmp.eq.s32.totalorder %s22, 1
      %p103 = scmp.ne.s32.totalorder %s98, %s100
      %p104 = scmp.eq.s32.totalorder %s22, 0
      %p105 = por %p103, %p104
      %p106 = scmp.ne.s32.totalorder %s98, %s100
      %p107 = scmp.eq.s32.totalorder %s27, 1
      %p108 = por %p106, %p107
      %p109 = scmp.ne.s32.totalorder %s100, %s101
      %p110 = scmp.eq.s32.totalorder %s27, 0
      %p111 = por %p109, %p110
      %p112 = scmp.ne.s32.totalorder %s100, %s101
      %p113 = scmp.eq.s32.totalorder %s28, 1
      %p114 = por %p112, %p113
      %p116 = scmp.ne.s32.totalorder %s101, %s115
      %p117 = scmp.eq.s32.totalorder %s28, 0
      %p118 = por %p116, %p117
      %s120 = sadd.s32 %s119, 1
      %p123 = scmp.eq.s32.totalorder %s22, 1
      %p124 = scmp.ne.s32.totalorder %s119, %s121
      %p125 = scmp.eq.s32.totalorder %s22, 0
      %p126 = por %p124, %p125
      %p127 = scmp.ne.s32.totalorder %s119, %s121
      %p128 = scmp.eq.s32.totalorder %s27, 1
      %p129 = por %p127, %p128
      %p130 = scmp.ne.s32.totalorder %s121, %s122
      %p131 = scmp.eq.s32.totalorder %s27, 0
      %p132 = por %p130, %p131
      %p133 = scmp.ne.s32.totalorder %s121, %s122
      %p134 = scmp.eq.s32.totalorder %s28, 1
      %p135 = por %p133, %p134
      %p137 = scmp.ne.s32.totalorder %s122, %s136
      %p138 = scmp.eq.s32.totalorder %s28, 0
      %p139 = por %p137, %p138
      %s141 = sadd.s32 %s140, 1
      %p144 = scmp.eq.s32.totalorder %s22, 1
      %p145 = scmp.ne.s32.totalorder %s140, %s142
      %p146 = scmp.eq.s32.totalorder %s22, 0
      %p147 = por %p145, %p146
      %p148 = scmp.ne.s32.totalorder %s140, %s142
      %p149 = scmp.eq.s32.totalorder %s27, 1
      %p150 = por %p148, %p149
      %p151 = scmp.ne.s32.totalorder %s142, %s143
      %p152 = scmp.eq.s32.totalorder %s27, 0
      %p153 = por %p151, %p152
      %p154 = scmp.ne.s32.totalorder %s142, %s143
      %p155 = scmp.eq.s32.totalorder %s28, 1
      %p156 = por %p154, %p155
      %p158 = scmp.ne.s32.totalorder %s143, %s157
      %p159 = scmp.eq.s32.totalorder %s28, 0
      %p160 = por %p158, %p159
      %s162 = sadd.s32 %s161, 1
      %p165 = scmp.eq.s32.totalorder %s22, 1
      %p166 = scmp.ne.s32.totalorder %s161, %s163
      %p167 = scmp.eq.s32.totalorder %s22, 0
      %p168 = por %p166, %p167
      %p169 = scmp.ne.s32.totalorder %s161, %s163
      %p170 = scmp.eq.s32.totalorder %s27, 1
      %p171 = por %p169, %p170
      %p172 = scmp.ne.s32.totalorder %s163, %s164
      %p173 = scmp.eq.s32.totalorder %s27, 0
      %p174 = por %p172, %p173
      %p175 = scmp.ne.s32.totalorder %s163, %s164
      %p176 = scmp.eq.s32.totalorder %s28, 1
      %p177 = por %p175, %p176
      %p179 = scmp.ne.s32.totalorder %s164, %s178
      %p180 = scmp.eq.s32.totalorder %s28, 0
      %p181 = por %p179, %p180
      %s183 = sadd.s32 %s182, 1
      %p186 = scmp.eq.s32.totalorder %s22, 1
      %p187 = scmp.ne.s32.totalorder %s182, %s184
      %p188 = scmp.eq.s32.totalorder %s22, 0
      %p189 = por %p187, %p188
      %p190 = scmp.ne.s32.totalorder %s182, %s184
      %p191 = scmp.eq.s32.totalorder %s27, 1
      %p192 = por %p190, %p191
      %p193 = scmp.ne.s32.totalorder %s184, %s185
      %p194 = scmp.eq.s32.totalorder %s27, 0
      %p195 = por %p193, %p194
      %p196 = scmp.ne.s32.totalorder %s184, %s185
      %p197 = scmp.eq.s32.totalorder %s28, 1
      %p198 = por %p196, %p197
      %p200 = scmp.ne.s32.totalorder %s185, %s199
      %p201 = scmp.eq.s32.totalorder %s28, 0
      %p202 = por %p200, %p201
      %s203 = ssub.s32 %s22, %s29
      %p204 = scmp.eq.s32.totalorder %s203, 0
      %s206 = sadd.s32 %s205, 1
      %s207 = scalar_select %p204, %s205, %s206
      %p210 = pneg %p204
      %p211 = scmp.eq.s32.totalorder %s22, 1
      %p212 = por %p210, %p211
      %p213 = scmp.ne.s32.totalorder %s205, %s208
      %p214 = scmp.eq.s32.totalorder %s22, 0
      %p215 = por %p213, %p214
      %p216 = scmp.ne.s32.totalorder %s205, %s208
      %p217 = scmp.eq.s32.totalorder %s27, 1
      %p218 = por %p216, %p217
      %p219 = scmp.ne.s32.totalorder %s208, %s209
      %p220 = scmp.eq.s32.totalorder %s27, 0
      %p221 = por %p219, %p220
      %p222 = scmp.ne.s32.totalorder %s208, %s209
      %p223 = scmp.eq.s32.totalorder %s28, 1
      %p224 = por %p222, %p223
      %p226 = scmp.ne.s32.totalorder %s209, %s225
      %p227 = scmp.eq.s32.totalorder %s28, 0
      %p228 = por %p226, %p227
      %p229 = scmp.le.s32.totalorder 1, %s22
      %p230 = scmp.lt.s32.totalorder %s22, 3
      %p231 = pnand %p229, %p230
      %p232 = pneg %p231
      // Predicated region
      $region9: #{tpu_custom_call.1} parent=5 // pred_check
        _
      $region10: #{tpu_custom_call.1} parent=5 // pred_check_branch
        %234 = sbr.rel (%p231) target = $region12
      $region11: #{tpu_custom_call.1} parent=5 // pred_region
        %s235 = ssub.s32 %s22, 1
        // Predicated region
        $region13: #{tpu_custom_call.1} parent=11 // pred_check
          %p236 = pneg %p69
        $region14: #{tpu_custom_call.1} parent=11 // pred_check_branch
          %238 = sbr.rel (%p236) target = $region16
        $region15: #{tpu_custom_call.1} parent=11 // pred_region
          _
        $region16: #{tpu_custom_call.1} parent=11 // pred_fallthru
          _
        // Predicated region
        $region17: #{tpu_custom_call.1} parent=11 // pred_check
          %p239 = pneg %p90
        $region18: #{tpu_custom_call.1} parent=11 // pred_check_branch
          %241 = sbr.rel (%p239) target = $region20
        $region19: #{tpu_custom_call.1} parent=11 // pred_region
          %s243 = ssub.s32 2048, 2048
          %244 = vsyncadd [#allocation6], %s243
          %s245 = sshll.u32 [#allocation5], 4
          %s246 = int_to_ptr.vmem [resolvable:$true] %s245
          %251 = dma.hbm_to_vmem [thread:$0]  %s2, 2048, %s246, [#allocation6], 128, 128, 8
        $region20: #{tpu_custom_call.1} parent=11 // pred_fallthru
          _
        // Predicated region
        $region21: #{tpu_custom_call.1} parent=11 // pred_check
          %p252 = pneg %p111
        $region22: #{tpu_custom_call.1} parent=11 // pred_check_branch
          %254 = sbr.rel (%p252) target = $region24
        $region23: #{tpu_custom_call.1} parent=11 // pred_region
          _
        $region24: #{tpu_custom_call.1} parent=11 // pred_fallthru
          _
        // Predicated region
        $region25: #{tpu_custom_call.1} parent=11 // pred_check
          %p255 = pneg %p132
        $region26: #{tpu_custom_call.1} parent=11 // pred_check_branch
          %257 = sbr.rel (%p255) target = $region28
        $region27: #{tpu_custom_call.1} parent=11 // pred_region
          %s259 = ssub.s32 1024, 1024
          %260 = vsyncadd [#allocation6], %s259
          %s261 = sshll.u32 [#allocation7], 4
          %s262 = int_to_ptr.vmem [resolvable:$true] %s261
          %267 = dma.hbm_to_vmem [thread:$0]  %s4, 1024, %s262, [#allocation6], 64, 64, 4
        $region28: #{tpu_custom_call.1} parent=11 // pred_fallthru
          _
        // Predicated region
        $region29: #{tpu_custom_call.1} parent=11 // pred_check
          %p268 = pneg %p153
        $region30: #{tpu_custom_call.1} parent=11 // pred_check_branch
          %270 = sbr.rel (%p268) target = $region32
        $region31: #{tpu_custom_call.1} parent=11 // pred_region
          %s272 = ssub.s32 1024, 1024
          %273 = vsyncadd [#allocation9], %s272
          %s274 = sshll.u32 [#allocation8], 4
          %s275 = int_to_ptr.vmem [resolvable:$true] %s274
          %280 = dma.hbm_to_vmem [thread:$0]  %s5, 1024, %s275, [#allocation9], 64, 64, 4
        $region32: #{tpu_custom_call.1} parent=11 // pred_fallthru
          _
        // Predicated region
        $region33: #{tpu_custom_call.1} parent=11 // pred_check
          %p281 = pneg %p174
        $region34: #{tpu_custom_call.1} parent=11 // pred_check_branch
          %283 = sbr.rel (%p281) target = $region36
        $region35: #{tpu_custom_call.1} parent=11 // pred_region
          _
        $region36: #{tpu_custom_call.1} parent=11 // pred_fallthru
          _
        // Predicated region
        $region37: #{tpu_custom_call.1} parent=11 // pred_check
          %p284 = pneg %p195
        $region38: #{tpu_custom_call.1} parent=11 // pred_check_branch
          %286 = sbr.rel (%p284) target = $region40
        $region39: #{tpu_custom_call.1} parent=11 // pred_region
          _
        $region40: #{tpu_custom_call.1} parent=11 // pred_fallthru
          _
      $region12: #{tpu_custom_call.1} parent=5 // pred_fallthru
        _
      %p287 = scmp.lt.s32.totalorder %s22, 2
      // Predicated region
      $region41: #{tpu_custom_call.1} parent=5 // pred_check
        %p288 = pneg %p287
      $region42: #{tpu_custom_call.1} parent=5 // pred_check_branch
        %290 = sbr.rel (%p288) target = $region44
      $region43: #{tpu_custom_call.1} parent=5 // pred_region
        // Predicated region
        $region45: #{tpu_custom_call.1} parent=43 // pred_check
          %p291 = pneg %p42
        $region46: #{tpu_custom_call.1} parent=43 // pred_check_branch
          %293 = sbr.rel (%p291) target = $region48
        $region47: #{tpu_custom_call.1} parent=43 // pred_region
          %s294 = sand.u32 %s32, 1
          %s295 = scalar_lea.sflag [#allocation3], %s294
          %s296 = sand.u32 %s32, 1
          %s297 = smul.addr %s296, 24
          %s298 = scalar_lea.vmem [#allocation2], %s297
          %s299 = smul.u32 3, %s22
          %s301 = ssub.s32 384, 384
          %302 = vsyncadd %s295, %s301
          %s303 = smul.addr %s299, 128
          %s304 = scalar_lea.hbm %s0, %s303
          %s305 = sshll.u32 %s298, 4
          %s306 = int_to_ptr.vmem [resolvable:$true] %s305
          %311 = dma.hbm_to_vmem [thread:$0]  %s304, 384, %s306, %s295, 128, 128, 8
        $region48: #{tpu_custom_call.1} parent=43 // pred_fallthru
          _
      $region44: #{tpu_custom_call.1} parent=5 // pred_fallthru
        _
      %p312 = scmp.le.s32.totalorder 1, %s22
      %p313 = scmp.lt.s32.totalorder %s22, 3
      %p314 = pnand %p312, %p313
      %p315 = pneg %p314
      // Predicated region
      $region49: #{tpu_custom_call.1} parent=5 // pred_check
        _
      $region50: #{tpu_custom_call.1} parent=5 // pred_check_branch
        %317 = sbr.rel (%p314) target = $region52
      $region51: #{tpu_custom_call.1} parent=5 // pred_region
        %s318 = ssub.s32 %s22, 1
        %s319 = sand.u32 %s35, 1
        %s320 = scalar_lea.sflag [#allocation3], %s319
        %s321 = sand.u32 %s35, 1
        %s322 = smul.addr %s321, 24
        %s323 = scalar_lea.vmem [#allocation2], %s322
        // Predicated region
        $region53: #{tpu_custom_call.1} parent=51 // pred_check
          %p324 = pneg %p48
        $region54: #{tpu_custom_call.1} parent=51 // pred_check_branch
          %326 = sbr.rel (%p324) target = $region56
        $region55: #{tpu_custom_call.1} parent=51 // pred_region
          %327 = dma.done %s320, 384
        $region56: #{tpu_custom_call.1} parent=51 // pred_fallthru
          _
        // Predicated region
        $region57: #{tpu_custom_call.1} parent=51 // pred_check
          %p328 = pneg %p90
        $region58: #{tpu_custom_call.1} parent=51 // pred_check_branch
          %330 = sbr.rel (%p328) target = $region60
        $region59: #{tpu_custom_call.1} parent=51 // pred_region
          %331 = dma.done [#allocation6], 2048
        $region60: #{tpu_custom_call.1} parent=51 // pred_fallthru
          _
        // Predicated region
        $region61: #{tpu_custom_call.1} parent=51 // pred_check
          %p332 = pneg %p132
        $region62: #{tpu_custom_call.1} parent=51 // pred_check_branch
          %334 = sbr.rel (%p332) target = $region64
        $region63: #{tpu_custom_call.1} parent=51 // pred_region
          %335 = dma.done [#allocation6], 1024
        $region64: #{tpu_custom_call.1} parent=51 // pred_fallthru
          _
        // Predicated region
        $region65: #{tpu_custom_call.1} parent=51 // pred_check
          %p336 = pneg %p153
        $region66: #{tpu_custom_call.1} parent=51 // pred_check_branch
          %338 = sbr.rel (%p336) target = $region68
        $region67: #{tpu_custom_call.1} parent=51 // pred_region
          %339 = dma.done [#allocation9], 1024
        $region68: #{tpu_custom_call.1} parent=51 // pred_fallthru
          _
        %s340 = sand.u32 %s35, 1
        %s341 = scalar_lea.sflag [#allocation3], %s340
        %s342 = sand.u32 %s35, 1
        %s343 = smul.addr %s342, 24
        %s344 = scalar_lea.vmem [#allocation2], %s343
        %p345 = pneg %p48
        %p346 = pneg %p45
        %p347 = pneg %p69
        %p348 = pneg %p66
        %p349 = pneg %p90
        %p350 = pneg %p87
        %p351 = pneg %p111
        %p352 = pneg %p108
        %p353 = pneg %p132
        %p354 = pneg %p129
        %p355 = pneg %p153
        %p356 = pneg %p150
        %p357 = pneg %p174
        %p358 = pneg %p171
        %p359 = pneg %p195
        %p360 = pneg %p192
        %p361 = pneg %p221
        %p362 = pneg %p218
        %s363 = sand.u32 %s208, 1
        %s364 = scalar_lea.sflag [#allocation4], %s363
        %s365 = sand.u32 %s208, 1
        %s366 = smul.addr %s365, 24
        %s367 = scalar_lea.vmem [#allocation10], %s366
        %s368 = smul.u32 3, %s27
        %s369 = smul.u32 3, %s27
        %v371 = vld [vmem:[%s323] sm:$0xff]
        %v372 = vld [vmem:[%s323 + $0x8] sm:$0xff]
        %v373 = vld [vmem:[%s323 + $0x10] sm:$0xff]
        %v374 = vld [vmem:[%s1] sm:$0x1]
        %v376 = vlaneseq
        %v377 = vshrl.u32 %v376, 7
        %v378 = vsub.s32 0, %v377
        %v379 = vrot.slane %v374, %v378
        %v381 = vmul.f32 %v379, %v371
        %v382 = vmul.f32 %v379, %v372
        %v383 = vmul.f32 %v379, %v373
        %v384 = vld [vmem:[#allocation5] sm:$0xff]
        %v385 = vld [vmem:[#allocation5 + $0x8] sm:$0xff]
        %v386 = vld [vmem:[#allocation5 + $0x10] sm:$0xff]
        %v387 = vld [vmem:[#allocation5 + $0x18] sm:$0xff]
        %v388 = vld [vmem:[#allocation5 + $0x20] sm:$0xff]
        %v389 = vld [vmem:[#allocation5 + $0x28] sm:$0xff]
        %v390 = vld [vmem:[#allocation5 + $0x30] sm:$0xff]
        %v391 = vld [vmem:[#allocation5 + $0x38] sm:$0xff]
        %v392 = vld [vmem:[#allocation5 + $0x40] sm:$0xff]
        %v393 = vld [vmem:[#allocation5 + $0x48] sm:$0xff]
        %v394 = vld [vmem:[#allocation5 + $0x50] sm:$0xff]
        %v395 = vld [vmem:[#allocation5 + $0x58] sm:$0xff]
        %v396 = vld [vmem:[#allocation5 + $0x60] sm:$0xff]
        %v397 = vld [vmem:[#allocation5 + $0x68] sm:$0xff]
        %v398 = vld [vmem:[#allocation5 + $0x70] sm:$0xff]
        %v399 = vld [vmem:[#allocation5 + $0x78] sm:$0xff]
        %v400 = vpack.c.bf16 %v382, %v381
        %v401 = vpack.c.bf16 %v383, %v383
        %v402 = vld [vmem:[%s3] sm:$0x3]
        %v404 = vlaneseq
        %v405 = vshrl.u32 %v404, 7
        %v406 = vsub.s32 0, %v405
        %v407 = vrot.slane %v402, %v406
        %v408 = vlaneseq
        %v409 = vshrl.u32 %v408, 7
        %v410 = vsub.s32 1, %v409
        %v411 = vrot.slane %v402, %v410
        %v430 = vunpack.c.l.b16 %v384
        %v431 = vunpack.c.h.b16 %v384
        %v432 = vunpack.c.l.b16 %v385
        %v433 = vunpack.c.h.b16 %v385
        %v434 = vunpack.c.l.b16 %v386
        %v435 = vunpack.c.h.b16 %v386
        %v436 = vunpack.c.l.b16 %v387
        %v437 = vunpack.c.h.b16 %v387
        %v438 = vunpack.c.l.b16 %v388
        %v439 = vunpack.c.h.b16 %v388
        %v440 = vunpack.c.l.b16 %v389
        %v441 = vunpack.c.h.b16 %v389
        %v442 = vunpack.c.l.b16 %v390
        %v443 = vunpack.c.h.b16 %v390
        %v444 = vunpack.c.l.b16 %v391
        %v445 = vunpack.c.h.b16 %v391
        %v446 = vunpack.c.l.b16 %v392
        %v447 = vunpack.c.h.b16 %v392
        %v448 = vunpack.c.l.b16 %v393
        %v449 = vunpack.c.h.b16 %v393
        %v450 = vunpack.c.l.b16 %v394
        %v451 = vunpack.c.h.b16 %v394
        %v452 = vunpack.c.l.b16 %v395
        %v453 = vunpack.c.h.b16 %v395
        %v454 = vunpack.c.l.b16 %v396
        %v455 = vunpack.c.h.b16 %v396
        %v456 = vunpack.c.l.b16 %v397
        %v457 = vunpack.c.h.b16 %v397
        %v458 = vunpack.c.l.b16 %v398
        %v459 = vunpack.c.h.b16 %v398
        %v460 = vunpack.c.l.b16 %v399
        %v461 = vunpack.c.h.b16 %v399
        %v462 = vpack.c.b16 %v432, %v430
        %v463 = vpack.c.b16 %v433, %v431
        %v464 = vpack.c.b16 %v436, %v434
        %v465 = vpack.c.b16 %v437, %v435
        %v466 = vpack.c.b16 %v440, %v438
        %v467 = vpack.c.b16 %v441, %v439
        %v468 = vpack.c.b16 %v444, %v442
        %v469 = vpack.c.b16 %v445, %v443
        %v470 = vpack.c.b16 %v448, %v446
        %v471 = vpack.c.b16 %v449, %v447
        %v472 = vpack.c.b16 %v452, %v450
        %v473 = vpack.c.b16 %v453, %v451
        %v474 = vpack.c.b16 %v456, %v454
        %v475 = vpack.c.b16 %v457, %v455
        %v476 = vpack.c.b16 %v460, %v458
        %v477 = vpack.c.b16 %v461, %v459
        %494 = vmatprep.subr.bf16.mxu0 %v463
        %495 = vmatpush1.bf16.msra.mxu0 %v462
        %496 = vmatprep.subr.bf16.mxu0 %v465
        %497 = vmatpush1.bf16.msra.mxu0 %v464
        %498 = vmatprep.subr.bf16.mxu0 %v467
        %499 = vmatpush1.bf16.msra.mxu0 %v466
        %500 = vmatprep.subr.bf16.mxu0 %v469
        %501 = vmatpush1.bf16.msra.mxu0 %v468
        %502 = vmatprep.subr.bf16.mxu0 %v471
        %503 = vmatpush1.bf16.msra.mxu0 %v470
        %504 = vmatprep.subr.bf16.mxu0 %v473
        %505 = vmatpush1.bf16.msra.mxu0 %v472
        %506 = vmatprep.subr.bf16.mxu0 %v475
        %507 = vmatpush1.bf16.msra.mxu0 %v474
        %508 = vmatprep.subr.bf16.mxu0 %v477
        %509 = vmatpush1.bf16.msra.mxu0 %v476
        %510 = vmatprep.subr.bf16.mxu0 0
        %511 = vmatpush1.bf16.msra.mxu0 0
        %512 = vmatprep.subr.bf16.mxu0 0
        %513 = vmatpush1.bf16.msra.mxu0 0
        %514 = vmatprep.subr.bf16.mxu0 0
        %515 = vmatpush1.bf16.msra.mxu0 0
        %516 = vmatprep.subr.bf16.mxu0 0
        %517 = vmatpush1.bf16.msra.mxu0 0
        %518 = vmatprep.subr.bf16.mxu0 0
        %519 = vmatpush1.bf16.msra.mxu0 0
        %520 = vmatprep.subr.bf16.mxu0 0
        %521 = vmatpush1.bf16.msra.mxu0 0
        %522 = vmatprep.subr.bf16.mxu0 0
        %523 = vmatpush1.bf16.msra.mxu0 0
        %524 = vmatprep.subr.bf16.mxu0 0
        %525 = vmatpush1.bf16.msra.mxu0 0
        %526 = vmatprep.mubr.bf16.mxu0 0
        %527 = vmatmul.mubr.bf16.gmra.mrb[0].mxu0 %v400
        %v528 = vpop.f32.mrb[0].mxu0
        %v529 = vadd.f32 %v407, %v528
        %v530 = vpop.f32.mrb[0].mxu0
        %v531 = vadd.f32 %v411, %v530
        %v532 = vpop.f32.mrb[0].mxu0
        %v533 = vadd.f32 %v407, %v532
        %v534 = vpop.f32.mrb[0].mxu0
        %v535 = vadd.f32 %v411, %v534
        %536 = vmatprep.mubr.bf16.mxu0 0
        %537 = vmatmul.mubr.bf16.gmra.mrb[0].mxu0 %v401
        %v538 = vpop.f32.mrb[0].mxu0
        %v539 = vadd.f32 %v407, %v538
        %v540 = vpop.f32.mrb[0].mxu0
        %v541 = vadd.f32 %v411, %v540
        %v542 = vpop.f32.mrb[0].mxu0
        %v543 = vpop.f32.mrb[0].mxu0
        %544 = vdwg.mxu0
        %v545 = vtanh.pop %v529
        %v546 = vtanh.pop %v531
        %v547 = vtanh.pop %v533
        %v548 = vtanh.pop %v535
        %v549 = vtanh.pop %v539
        %v550 = vtanh.pop %v541
        %v551 = vpack.c.bf16 %v547, %v545
        %v552 = vpack.c.bf16 %v549, %v549
        %v553 = vld [vmem:[#allocation7] sm:$0xf]
        %v554 = vld [vmem:[#allocation7 + $0x4] sm:$0xf]
        %v555 = vld [vmem:[#allocation7 + $0x8] sm:$0xf]
        %v556 = vld [vmem:[#allocation7 + $0xc] sm:$0xf]
        %v557 = vld [vmem:[#allocation7 + $0x10] sm:$0xf]
        %v558 = vld [vmem:[#allocation7 + $0x14] sm:$0xf]
        %v559 = vld [vmem:[#allocation7 + $0x18] sm:$0xf]
        %v560 = vld [vmem:[#allocation7 + $0x1c] sm:$0xf]
        %v561 = vld [vmem:[#allocation7 + $0x20] sm:$0xf]
        %v562 = vld [vmem:[#allocation7 + $0x24] sm:$0xf]
        %v563 = vld [vmem:[#allocation7 + $0x28] sm:$0xf]
        %v564 = vld [vmem:[#allocation7 + $0x2c] sm:$0xf]
        %v565 = vld [vmem:[#allocation7 + $0x30] sm:$0xf]
        %v566 = vld [vmem:[#allocation7 + $0x34] sm:$0xf]
        %v567 = vld [vmem:[#allocation7 + $0x38] sm:$0xf]
        %v568 = vld [vmem:[#allocation7 + $0x3c] sm:$0xf]
        %v569 = vld [vmem:[%s6] sm:$0x1]
        %v571 = vlaneseq
        %v572 = vshrl.u32 %v571, 7
        %v573 = vsub.s32 0, %v572
        %v574 = vrot.slane %v569, %v573
        %v592 = vunpack.c.l.b16 %v553
        %v593 = vunpack.c.l.b16 %v554
        %v594 = vunpack.c.l.b16 %v555
        %v595 = vunpack.c.l.b16 %v556
        %v596 = vunpack.c.l.b16 %v557
        %v597 = vunpack.c.l.b16 %v558
        %v598 = vunpack.c.l.b16 %v559
        %v599 = vunpack.c.l.b16 %v560
        %v600 = vunpack.c.l.b16 %v561
        %v601 = vunpack.c.l.b16 %v562
        %v602 = vunpack.c.l.b16 %v563
        %v603 = vunpack.c.l.b16 %v564
        %v604 = vunpack.c.l.b16 %v565
        %v605 = vunpack.c.l.b16 %v566
        %v606 = vunpack.c.l.b16 %v567
        %v607 = vunpack.c.l.b16 %v568
        %v608 = vpack.c.b16 %v593, %v592
        %v609 = vpack.c.b16 %v595, %v594
        %v610 = vpack.c.b16 %v597, %v596
        %v611 = vpack.c.b16 %v599, %v598
        %v612 = vpack.c.b16 %v601, %v600
        %v613 = vpack.c.b16 %v603, %v602
        %v614 = vpack.c.b16 %v605, %v604
        %v615 = vpack.c.b16 %v607, %v606
        %624 = vmatprep.subr.bf16.mxu0 0
        %625 = vmatpush1.bf16.msra.mxu0 %v608
        %626 = vmatprep.subr.bf16.mxu0 0
        %627 = vmatpush1.bf16.msra.mxu0 %v609
        %628 = vmatprep.subr.bf16.mxu0 0
        %629 = vmatpush1.bf16.msra.mxu0 %v610
        %630 = vmatprep.subr.bf16.mxu0 0
        %631 = vmatpush1.bf16.msra.mxu0 %v611
        %632 = vmatprep.subr.bf16.mxu0 0
        %633 = vmatpush1.bf16.msra.mxu0 %v612
        %634 = vmatprep.subr.bf16.mxu0 0
        %635 = vmatpush1.bf16.msra.mxu0 %v613
        %636 = vmatprep.subr.bf16.mxu0 0
        %637 = vmatpush1.bf16.msra.mxu0 %v614
        %638 = vmatprep.subr.bf16.mxu0 0
        %639 = vmatpush1.bf16.msra.mxu0 %v615
        %640 = vmatprep.subr.bf16.mxu0 0
        %641 = vmatpush1.bf16.msra.mxu0 0
        %642 = vmatprep.subr.bf16.mxu0 0
        %643 = vmatpush1.bf16.msra.mxu0 0
        %644 = vmatprep.subr.bf16.mxu0 0
        %645 = vmatpush1.bf16.msra.mxu0 0
        %646 = vmatprep.subr.bf16.mxu0 0
        %647 = vmatpush1.bf16.msra.mxu0 0
        %648 = vmatprep.subr.bf16.mxu0 0
        %649 = vmatpush1.bf16.msra.mxu0 0
        %650 = vmatprep.subr.bf16.mxu0 0
        %651 = vmatpush1.bf16.msra.mxu0 0
        %652 = vmatprep.subr.bf16.mxu0 0
        %653 = vmatpush1.bf16.msra.mxu0 0
        %654 = vmatprep.subr.bf16.mxu0 0
        %655 = vmatpush1.bf16.msra.mxu0 0
        %656 = vmatprep.mubr.bf16.mxu0 0
        %657 = vmatmul.mubr.bf16.gmra.mrb[0].mxu0 %v551
        %v658 = vpop.f32.mrb[0].mxu0
        %v659 = vadd.f32 %v574, %v658
        %v660 = vpop.f32.mrb[0].mxu0
        %v661 = vpop.f32.mrb[0].mxu0
        %v662 = vadd.f32 %v574, %v661
        %v663 = vpop.f32.mrb[0].mxu0
        %664 = vmatprep.mubr.bf16.mxu0 0
        %665 = vmatmul.mubr.bf16.gmra.mrb[0].mxu0 %v552
        %v666 = vpop.f32.mrb[0].mxu0
        %v667 = vadd.f32 %v574, %v666
        %v668 = vpop.f32.mrb[0].mxu0
        %v669 = vpop.f32.mrb[0].mxu0
        %v670 = vpop.f32.mrb[0].mxu0
        %671 = vdwg.mxu0
        %v672 = vpack.c.bf16 %v548, %v546
        %v673 = vpack.c.bf16 %v550, %v550
        %v674 = vld [vmem:[#allocation8] sm:$0xf]
        %v675 = vld [vmem:[#allocation8 + $0x4] sm:$0xf]
        %v676 = vld [vmem:[#allocation8 + $0x8] sm:$0xf]
        %v677 = vld [vmem:[#allocation8 + $0xc] sm:$0xf]
        %v678 = vld [vmem:[#allocation8 + $0x10] sm:$0xf]
        %v679 = vld [vmem:[#allocation8 + $0x14] sm:$0xf]
        %v680 = vld [vmem:[#allocation8 + $0x18] sm:$0xf]
        %v681 = vld [vmem:[#allocation8 + $0x1c] sm:$0xf]
        %v682 = vld [vmem:[#allocation8 + $0x20] sm:$0xf]
        %v683 = vld [vmem:[#allocation8 + $0x24] sm:$0xf]
        %v684 = vld [vmem:[#allocation8 + $0x28] sm:$0xf]
        %v685 = vld [vmem:[#allocation8 + $0x2c] sm:$0xf]
        %v686 = vld [vmem:[#allocation8 + $0x30] sm:$0xf]
        %v687 = vld [vmem:[#allocation8 + $0x34] sm:$0xf]
        %v688 = vld [vmem:[#allocation8 + $0x38] sm:$0xf]
        %v689 = vld [vmem:[#allocation8 + $0x3c] sm:$0xf]
        %v690 = vld [vmem:[%s7] sm:$0x1]
        %v692 = vlaneseq
        %v693 = vshrl.u32 %v692, 7
        %v694 = vsub.s32 0, %v693
        %v695 = vrot.slane %v690, %v694
        %v713 = vunpack.c.l.b16 %v674
        %v714 = vunpack.c.l.b16 %v675
        %v715 = vunpack.c.l.b16 %v676
        %v716 = vunpack.c.l.b16 %v677
        %v717 = vunpack.c.l.b16 %v678
        %v718 = vunpack.c.l.b16 %v679
        %v719 = vunpack.c.l.b16 %v680
        %v720 = vunpack.c.l.b16 %v681
        %v721 = vunpack.c.l.b16 %v682
        %v722 = vunpack.c.l.b16 %v683
        %v723 = vunpack.c.l.b16 %v684
        %v724 = vunpack.c.l.b16 %v685
        %v725 = vunpack.c.l.b16 %v686
        %v726 = vunpack.c.l.b16 %v687
        %v727 = vunpack.c.l.b16 %v688
        %v728 = vunpack.c.l.b16 %v689
        %v729 = vpack.c.b16 %v714, %v713
        %v730 = vpack.c.b16 %v716, %v715
        %v731 = vpack.c.b16 %v718, %v717
        %v732 = vpack.c.b16 %v720, %v719
        %v733 = vpack.c.b16 %v722, %v721
        %v734 = vpack.c.b16 %v724, %v723
        %v735 = vpack.c.b16 %v726, %v725
        %v736 = vpack.c.b16 %v728, %v727
        %745 = vmatprep.subr.bf16.mxu0 0
        %746 = vmatpush1.bf16.msra.mxu0 %v729
        %747 = vmatprep.subr.bf16.mxu0 0
        %748 = vmatpush1.bf16.msra.mxu0 %v730
        %749 = vmatprep.subr.bf16.mxu0 0
        %750 = vmatpush1.bf16.msra.mxu0 %v731
        %751 = vmatprep.subr.bf16.mxu0 0
        %752 = vmatpush1.bf16.msra.mxu0 %v732
        %753 = vmatprep.subr.bf16.mxu0 0
        %754 = vmatpush1.bf16.msra.mxu0 %v733
        %755 = vmatprep.subr.bf16.mxu0 0
        %756 = vmatpush1.bf16.msra.mxu0 %v734
        %757 = vmatprep.subr.bf16.mxu0 0
        %758 = vmatpush1.bf16.msra.mxu0 %v735
        %759 = vmatprep.subr.bf16.mxu0 0
        %760 = vmatpush1.bf16.msra.mxu0 %v736
        %761 = vmatprep.subr.bf16.mxu0 0
        %762 = vmatpush1.bf16.msra.mxu0 0
        %763 = vmatprep.subr.bf16.mxu0 0
        %764 = vmatpush1.bf16.msra.mxu0 0
        %765 = vmatprep.subr.bf16.mxu0 0
        %766 = vmatpush1.bf16.msra.mxu0 0
        %767 = vmatprep.subr.bf16.mxu0 0
        %768 = vmatpush1.bf16.msra.mxu0 0
        %769 = vmatprep.subr.bf16.mxu0 0
        %770 = vmatpush1.bf16.msra.mxu0 0
        %771 = vmatprep.subr.bf16.mxu0 0
        %772 = vmatpush1.bf16.msra.mxu0 0
        %773 = vmatprep.subr.bf16.mxu0 0
        %774 = vmatpush1.bf16.msra.mxu0 0
        %775 = vmatprep.subr.bf16.mxu0 0
        %776 = vmatpush1.bf16.msra.mxu0 0
        %777 = vmatprep.mubr.bf16.mxu0 0
        %778 = vmatmul.mubr.bf16.gmra.mrb[0].mxu0 %v672
        %v779 = vpop.f32.mrb[0].mxu0
        %v780 = vadd.f32 %v695, %v779
        %v781 = vpop.f32.mrb[0].mxu0
        %v782 = vpop.f32.mrb[0].mxu0
        %v783 = vadd.f32 %v695, %v782
        %v784 = vpop.f32.mrb[0].mxu0
        %785 = vmatprep.mubr.bf16.mxu0 0
        %786 = vmatmul.mubr.bf16.gmra.mrb[0].mxu0 %v673
        %v787 = vpop.f32.mrb[0].mxu0
        %v788 = vadd.f32 %v695, %v787
        %v789 = vpop.f32.mrb[0].mxu0
        %v790 = vpop.f32.mrb[0].mxu0
        %v791 = vpop.f32.mrb[0].mxu0
        %792 = vdwg.mxu0
        %v793 = vsub.f32 1.0, %v374
        %v794 = vmul.f32 %v659, 1.442695
        %v795 = vpow.pop %v794
        %v796 = vmul.f32 %v662, 1.442695
        %v797 = vpow.pop %v796
        %v798 = vmul.f32 %v667, 1.442695
        %v799 = vpow.pop %v798
        %v800 = vmul.f32 %v795, %v371
        %v801 = vmul.f32 %v797, %v372
        %v802 = vmul.f32 %v799, %v373
        %v803 = vadd.f32 %v800, %v780
        %v804 = vadd.f32 %v801, %v783
        %v805 = vadd.f32 %v802, %v788
        %v807 = vlaneseq
        %v808 = vshrl.u32 %v807, 7
        %v809 = vsub.s32 0, %v808
        %v810 = vrot.slane %v793, %v809
        %v812 = vmul.f32 %v810, %v803
        %v813 = vmul.f32 %v810, %v804
        %v814 = vmul.f32 %v810, %v805
        %v815 = vadd.f32 %v381, %v812
        %v816 = vadd.f32 %v382, %v813
        %v817 = vadd.f32 %v383, %v814
        %v818 = vmul.f32 %v810, %v659
        %v819 = vmul.f32 %v810, %v662
        %v820 = vmul.f32 %v810, %v667
        %821 = vadd.xlane.f32.xlu0 %v818
        %v822 = vpop.xlane.xlu0 %821
        %823 = vadd.xlane.f32.xlu0 %v819
        %v824 = vpop.xlane.xlu0 %823
        %825 = vadd.xlane.f32.xlu0 %v820
        %v826 = vpop.xlane.xlu0 %825
        %v827 = vlaneseq
        %v828 = vand.u32 %v827, 127
        %vm829 = vcmp.eq.s32.totalorder %v828, 16
        %v830 = vsel %vm829, %v822, %v815
        %v831 = vsel %vm829, %v824, %v816
        %v832 = vsel %vm829, %v826, %v817
        %833 = vst [vmem:[%s367] sm:$0xff] %v830
        %834 = vst [vmem:[%s367 + $0x8] sm:$0xff] %v831
        %835 = vst [vmem:[%s367 + $0x10] sm:$0xff] %v832
        %s836 = sand.u32 %s208, 1
        %s837 = scalar_lea.sflag [#allocation4], %s836
        %s838 = sand.u32 %s208, 1
        %s839 = smul.addr %s838, 24
        %s840 = scalar_lea.vmem [#allocation10], %s839
        // Predicated region
        $region69: #{tpu_custom_call.1} parent=51 // pred_check
          %p841 = pneg %p218
        $region70: #{tpu_custom_call.1} parent=51 // pred_check_branch
          %843 = sbr.rel (%p841) target = $region72
        $region71: #{tpu_custom_call.1} parent=51 // pred_region
          %s844 = smul.u32 3, %s27
          %s846 = ssub.s32 384, 384
          %847 = vsyncadd %s837, %s846
          %s848 = smul.addr %s844, 128
          %s849 = scalar_lea.hbm %s8, %s848
          %s850 = sshll.u32 %s840, 4
          %s851 = int_to_ptr.vmem [resolvable:$true] %s850
          %856 = dma.vmem_to_hbm [thread:$0]  %s851, 384, %s849, %s837, 128, 128, 8
        $region72: #{tpu_custom_call.1} parent=51 // pred_fallthru
          _
      $region52: #{tpu_custom_call.1} parent=5 // pred_fallthru
        _
      %p857 = scmp.le.s32.totalorder 2, %s22
      // Predicated region
      $region73: #{tpu_custom_call.1} parent=5 // pred_check
        %p858 = pneg %p857
      $region74: #{tpu_custom_call.1} parent=5 // pred_check_branch
        %860 = sbr.rel (%p858) target = $region76
      $region75: #{tpu_custom_call.1} parent=5 // pred_region
        %s861 = ssub.s32 %s22, 2
        // Predicated region
        $region77: #{tpu_custom_call.1} parent=75 // pred_check
          %p862 = pneg %p224
        $region78: #{tpu_custom_call.1} parent=75 // pred_check_branch
          %864 = sbr.rel (%p862) target = $region80
        $region79: #{tpu_custom_call.1} parent=75 // pred_region
          %s865 = sand.u32 %s209, 1
          %s866 = scalar_lea.sflag [#allocation4], %s865
          %s867 = sand.u32 %s209, 1
          %s868 = smul.addr %s867, 24
          %s869 = scalar_lea.vmem [#allocation10], %s868
          %870 = dma.done %s866, 384
        $region80: #{tpu_custom_call.1} parent=75 // pred_fallthru
          _
      $region76: #{tpu_custom_call.1} parent=5 // pred_fallthru
        _
    $region6: #{tpu_custom_call.1} parent=1 // loop_footer
      %s26 = sadd.s32 1, %s22
    $region7: #{tpu_custom_call.1} parent=1 // loop_footer_branch
      %21 = sbr.rel target = $region3
    $region8: #{tpu_custom_call.1} parent=1 // loop_exit
      _
    %871 = vsyncpa [#allocation3], 1
    %s872 = scalar_lea.sflag [#allocation3], 1
    %873 = vsyncpa %s872, 1
    %874 = vsyncpa [#allocation6], 1
    %875 = vsyncpa [#allocation9], 1
    %876 = vsyncpa [#allocation4], 1
    %s877 = scalar_lea.sflag [#allocation4], 1
    %878 = vsyncpa %s877, 1

</llo_original>
